<compile_context>
chip_gen: v5e
topology: v5e:2x2
jax: 0.10.0
libtpu: 0.0.40
codegen_flags: <defaults>
</compile_context>

<pallas_src>
import jax
import jax.numpy as jnp
import numpy as np
from jax.experimental import pallas as pl
from jax.experimental.pallas import tpu as pltpu

IN_FEATURES = 768      # BERT pooled-output width (self.in_features)
LEN_FEATURES = 16      # numeric-feature width
NUM_PAD = 128          # lane-dense padded numeric-feature width
H1 = 256
H2 = 64
H2_PAD = 128           # lane-dense padded hidden width for layers 2/3
OUT = 10
OUT_PAD = 128          # lane-dense padded output width
BN_EPS = 1e-5          # PyTorch BatchNorm1d default eps
VOCAB = 128            # stand-in vocab for the encoder TODO below
MAX_TM = 512           # batch-tile cap (VMEM use stays < 6 MiB double-buffered)


def _round_up(x, m):
    return (x + m - 1) // m * m


def _pick_batch_tile(b):
    """Batch tile: multiple of 16 (bf16 sublanes). Once the batch is large,
    256-aligned (v6e/v7x 256x256 MXU M dim) and sized for >=2 grid steps so
    the parallel batch axis shards across v7x's two TensorCores."""
    b16 = _round_up(b, 16)
    if b16 <= 256:
        return b16
    return min(MAX_TM, _round_up((b16 + 1) // 2, 256))


# --------------------------------------------------------------------------- #
# Kernel: pooler dense + tanh, then the full head (BN folded into weights).
# --------------------------------------------------------------------------- #
def fused_kernel(xb_ref, xn_ref,
                 wp_ref,
                 w1a_ref, w1b_ref, b1_ref,
                 w2_ref, b2_ref,
                 w3_ref, b3_ref,
                 out_ref):
    # --- BERT pooler (stand-in): tanh(mean @ Wp); dropout == identity (eval) ---
    pooled = jnp.tanh(jnp.dot(xb_ref[...], wp_ref[...],
                              preferred_element_type=jnp.float32))
    pooled = pooled.astype(jnp.bfloat16)

    # --- Linear(784 -> 256) + folded BatchNorm1d(256); concat folded into
    #     split matmuls: cat([pooled, num]) @ W1 == pooled @ W1a + num @ W1b.
    #     num path is zero-padded to K=128 (lane-dense bf16). ---
    h = (jnp.dot(pooled, w1a_ref[...], preferred_element_type=jnp.float32)
         + jnp.dot(xn_ref[...], w1b_ref[...], preferred_element_type=jnp.float32)
         + b1_ref[...])
    h = jnp.maximum(h, 0.0).astype(jnp.bfloat16)          # ReLU in f32, cast for MXU

    # --- Linear(256 -> 64) + folded BatchNorm1d(64) + ReLU, widened to 128
    #     lanes (zero columns) so h stays a lane-dense (tm,128) bf16 slab. ---
    h = jnp.dot(h, w2_ref[...], preferred_element_type=jnp.float32) + b2_ref[...]
    h = jnp.maximum(h, 0.0).astype(jnp.bfloat16)

    # --- Linear(64 -> 10), K padded to 128 / N padded to 128 (sliced to 10
    #     in the wrapper) -> unmasked vector stores, clean MXU dims. ---
    out_ref[...] = (jnp.dot(h, w3_ref[...], preferred_element_type=jnp.float32)
                    + b3_ref[...])


# --------------------------------------------------------------------------- #
# Encoder stand-in (shared by wrapper and reference so numerics match).
# --------------------------------------------------------------------------- #
def _encode_mean(ids, emb_bf16):
    # TODO(synk): the pretrained BERT encoder (AutoModel.from_pretrained) has no
    # in-script Pallas equivalent; embedding-gather + mean-pool stands in (kept
    # in bf16 with f32 accumulation to halve the wrapper-side HBM traffic).
    # The encoder's dense pooler (768x768 + tanh) IS fused inside the kernel.
    return jnp.mean(emb_bf16[ids], axis=1, dtype=jnp.float32).astype(jnp.bfloat16)


# --------------------------------------------------------------------------- #
# Wrapper: batch tiling, weight residency, bf16 casts, output slice.
# --------------------------------------------------------------------------- #
@jax.jit
def foursquare_forward(ids, num_features, kp):
    xb = _encode_mean(ids, kp["emb"])                       # (B, 768) bf16

    B = ids.shape[0]
    tm = _pick_batch_tile(B)
    bp = _round_up(B, tm)
    n_steps = bp // tm

    # Numeric features: zero-pad batch to bp and width 16 -> 128 lanes.
    xn = jnp.zeros((bp, NUM_PAD), jnp.bfloat16)
    xn = xn.at[:B, :LEN_FEATURES].set(num_features.astype(jnp.bfloat16))
    if bp != B:
        xb = jnp.pad(xb, ((0, bp - B), (0, 0)))

    weights = (kp["wp"], kp["w1a"], kp["w1b"], kp["b1"],
               kp["w2"], kp["b2"], kp["w3"], kp["b3"])
    # Weights: constant block index -> stay VMEM-resident across the batch grid.
    w_specs = [pl.BlockSpec(w.shape, lambda i: (0, 0)) for w in weights]

    # Advisory cost estimate so XLA overlaps the gather/mean producer + slice.
    flops = 2 * bp * (IN_FEATURES * IN_FEATURES
                      + IN_FEATURES * H1 + NUM_PAD * H1
                      + H1 * H2_PAD + H2_PAD * OUT_PAD)
    w_bytes = sum(int(np.prod(w.shape)) * w.dtype.itemsize for w in weights)
    act_bytes = bp * (IN_FEATURES * 2 + NUM_PAD * 2 + OUT_PAD * 4)
    cost = pl.CostEstimate(flops=flops,
                           transcendentals=bp * IN_FEATURES,
                           bytes_accessed=w_bytes + act_bytes)

    out = pl.pallas_call(
        fused_kernel,
        out_shape=jax.ShapeDtypeStruct((bp, OUT_PAD), jnp.float32),
        grid=(n_steps,),
        in_specs=[pl.BlockSpec((tm, IN_FEATURES), lambda i: (i, 0)),
                  pl.BlockSpec((tm, NUM_PAD), lambda i: (i, 0))] + w_specs,
        out_specs=pl.BlockSpec((tm, OUT_PAD), lambda i: (i, 0)),
        compiler_params=pltpu.CompilerParams(
            dimension_semantics=("parallel",)),             # megacore / v7x 2-TC
        cost_estimate=cost,
    )(xb, xn, *weights)

    return out[:B, :OUT]


# --------------------------------------------------------------------------- #
# Parameter preparation: fold eval-mode BatchNorm into Linear, pad to
# lane-dense shapes (zeros keep the math identical), cast matmul operands bf16.
# --------------------------------------------------------------------------- #
def _fold_bn(w, b, gamma, beta, mu, var, eps=BN_EPS):
    scale = gamma * jax.lax.rsqrt(var + eps)                # (1, H)
    return w * scale, (b - mu) * scale + beta               # (in,H)*(1,H), (1,H)


def prepare_kernel_params(raw):
    w1, b1 = _fold_bn(raw["w1"], raw["b1"], raw["g1"], raw["be1"],
                      raw["m1"], raw["v1"])
    w2, b2 = _fold_bn(raw["w2"], raw["b2"], raw["g2"], raw["be2"],
                      raw["m2"], raw["v2"])

    # numeric path: K padded 16 -> 128 with zero rows
    w1b = jnp.zeros((NUM_PAD, H1), jnp.float32).at[:LEN_FEATURES].set(
        w1[IN_FEATURES:])
    # hidden-64 path: N padded 64 -> 128 with zero cols (ReLU(0+0) == 0)
    w2p = jnp.zeros((H1, H2_PAD), jnp.float32).at[:, :H2].set(w2)
    b2p = jnp.zeros((1, H2_PAD), jnp.float32).at[:, :H2].set(b2)
    # final projection: K padded 64 -> 128 (zero rows), N padded 10 -> 128
    w3 = jnp.zeros((H2_PAD, OUT_PAD), jnp.float32).at[:H2, :OUT].set(raw["w3"])
    b3 = jnp.zeros((1, OUT_PAD), jnp.float32).at[:, :OUT].set(raw["b3"])

    return {
        "emb": raw["emb"].astype(jnp.bfloat16),
        "wp":  raw["wp"].astype(jnp.bfloat16),
        "w1a": w1[:IN_FEATURES].astype(jnp.bfloat16),
        "w1b": w1b.astype(jnp.bfloat16),
        "b1":  b1.astype(jnp.float32),
        "w2":  w2p.astype(jnp.bfloat16),
        "b2":  b2p.astype(jnp.float32),
        "w3":  w3.astype(jnp.bfloat16),
        "b3":  b3.astype(jnp.float32),
    }


def init_raw_params(key):
    ks = jax.random.split(key, 16)
    p = {}
    # Linear 1 stored as (in, out) = (784, 256)
    p["w1"] = jax.random.normal(ks[0], (IN_FEATURES + LEN_FEATURES, H1), jnp.float32) * 0.02
    p["b1"] = jax.random.normal(ks[1], (1, H1), jnp.float32) * 0.02
    # BatchNorm1d(256) affine + running stats
    p["g1"] = jax.random.uniform(ks[2], (1, H1), jnp.float32, 0.5, 1.5)
    p["be1"] = jax.random.normal(ks[3], (1, H1), jnp.float32) * 0.02
    p["m1"] = jax.random.normal(ks[4], (1, H1), jnp.float32) * 0.02
    p["v1"] = jax.random.uniform(ks[5], (1, H1), jnp.float32, 0.5, 1.5)
    # Linear 2
    p["w2"] = jax.random.normal(ks[6], (H1, H2), jnp.float32) * 0.05
    p["b2"] = jax.random.normal(ks[7], (1, H2), jnp.float32) * 0.02
    # BatchNorm1d(64)
    p["g2"] = jax.random.uniform(ks[8], (1, H2), jnp.float32, 0.5, 1.5)
    p["be2"] = jax.random.normal(ks[9], (1, H2), jnp.float32) * 0.02
    p["m2"] = jax.random.normal(ks[10], (1, H2), jnp.float32) * 0.02
    p["v2"] = jax.random.uniform(ks[11], (1, H2), jnp.float32, 0.5, 1.5)
    # Linear 3
    p["w3"] = jax.random.normal(ks[12], (H2, OUT), jnp.float32) * 0.1
    p["b3"] = jax.random.normal(ks[13], (1, OUT), jnp.float32) * 0.02
    # Stand-in BERT pieces: pooler dense + token embedding table
    p["wp"] = jax.random.normal(ks[14], (IN_FEATURES, IN_FEATURES), jnp.float32) * 0.02
    p["emb"] = jax.random.normal(ks[15], (VOCAB, IN_FEATURES), jnp.float32) * 0.02
    return p


# --------------------------------------------------------------------------- #
# Pure-JAX reference (same folded/padded bf16 params, same op order).
# --------------------------------------------------------------------------- #
def reference_forward(ids, num_features, kp):
    xb = _encode_mean(ids, kp["emb"])
    pooled = jnp.tanh(jnp.dot(xb, kp["wp"],
                              preferred_element_type=jnp.float32)).astype(jnp.bfloat16)
    xn = jnp.zeros((ids.shape[0], NUM_PAD), jnp.bfloat16)
    xn = xn.at[:, :LEN_FEATURES].set(num_features.astype(jnp.bfloat16))
    h = (jnp.dot(pooled, kp["w1a"], preferred_element_type=jnp.float32)
         + jnp.dot(xn, kp["w1b"], preferred_element_type=jnp.float32)
         + kp["b1"])
    h = jnp.maximum(h, 0.0).astype(jnp.bfloat16)
    h = jnp.dot(h, kp["w2"], preferred_element_type=jnp.float32) + kp["b2"]
    h = jnp.maximum(h, 0.0).astype(jnp.bfloat16)
    out = jnp.dot(h, kp["w3"], preferred_element_type=jnp.float32) + kp["b3"]
    return out[:, :OUT]


if __name__ == "__main__":
    key = jax.random.PRNGKey(0)
    k_ids, k_feat, k_params = jax.random.split(key, 3)

    B, S = 8, 8
    ids = jax.random.randint(k_ids, (B, S), 0, VOCAB, dtype=jnp.int32)
    num_features = jax.random.normal(k_feat, (B, LEN_FEATURES), jnp.float32)

    raw = init_raw_params(k_params)
    kparams = prepare_kernel_params(raw)

    logits = foursquare_forward(ids, num_features, kparams)
    jax.block_until_ready(logits)
    assert logits.shape == (B, OUT) and logits.dtype == jnp.float32

    ref = reference_forward(ids, num_features, kparams)
    np.testing.assert_allclose(np.asarray(logits), np.asarray(ref),
                               rtol=1e-2, atol=1e-2)
    print("KERNEL_OK")
</pallas_src>

<mosaic_0001>
module attributes {stable_mosaic.version = 11 : i64} {
  func.func @fused_kernel(%arg0: i32, %arg1: memref<16x768xbf16, #tpu.memory_space<vmem>>, %arg2: memref<16x128xbf16, #tpu.memory_space<vmem>>, %arg3: memref<768x768xbf16, #tpu.memory_space<vmem>>, %arg4: memref<768x256xbf16, #tpu.memory_space<vmem>>, %arg5: memref<128x256xbf16, #tpu.memory_space<vmem>>, %arg6: memref<1x256xf32, #tpu.memory_space<vmem>>, %arg7: memref<256x128xbf16, #tpu.memory_space<vmem>>, %arg8: memref<1x128xf32, #tpu.memory_space<vmem>>, %arg9: memref<128x128xbf16, #tpu.memory_space<vmem>>, %arg10: memref<1x128xf32, #tpu.memory_space<vmem>>, %arg11: memref<16x128xf32, #tpu.memory_space<vmem>>) attributes {dimension_semantics = [#tpu.dimension_semantics<parallel>], iteration_bounds = array<i64: 1>, scalar_prefetch = 0 : i64, scratch_operands = 0 : i64, tpu.core_type = #tpu.core_type<tc>, window_params = [{transform_indices = @transform_0, window_bounds = array<i64: 16, 768>}, {transform_indices = @transform_1, window_bounds = array<i64: 16, 128>}, {pipeline_mode = #tpu.pipeline_mode<synchronous>, transform_indices = @transform_2, window_bounds = array<i64: 768, 768>}, {pipeline_mode = #tpu.pipeline_mode<synchronous>, transform_indices = @transform_3, window_bounds = array<i64: 768, 256>}, {pipeline_mode = #tpu.pipeline_mode<synchronous>, transform_indices = @transform_4, window_bounds = array<i64: 128, 256>}, {pipeline_mode = #tpu.pipeline_mode<synchronous>, transform_indices = @transform_5, window_bounds = array<i64: 1, 256>}, {pipeline_mode = #tpu.pipeline_mode<synchronous>, transform_indices = @transform_6, window_bounds = array<i64: 256, 128>}, {pipeline_mode = #tpu.pipeline_mode<synchronous>, transform_indices = @transform_7, window_bounds = array<i64: 1, 128>}, {pipeline_mode = #tpu.pipeline_mode<synchronous>, transform_indices = @transform_8, window_bounds = array<i64: 128, 128>}, {pipeline_mode = #tpu.pipeline_mode<synchronous>, transform_indices = @transform_9, window_bounds = array<i64: 1, 128>}, {transform_indices = @transform_10, window_bounds = array<i64: 16, 128>}]} {
    %c0 = arith.constant 0 : index
    %c0_0 = arith.constant 0 : index
    %0 = vector.load %arg1[%c0, %c0_0] : memref<16x768xbf16, #tpu.memory_space<vmem>>, vector<16x768xbf16>
    %c0_1 = arith.constant 0 : index
    %c0_2 = arith.constant 0 : index
    %1 = vector.load %arg3[%c0_1, %c0_2] : memref<768x768xbf16, #tpu.memory_space<vmem>>, vector<768x768xbf16>
    %cst = arith.constant dense<0.000000e+00> : vector<16x768xf32>
    %2 = tpu.matmul %0, %1, %cst {dimension_numbers = #tpu.dot_dimension_numbers<[1], [0], [0], [1], [0, 0, 1, 1], [], []>} : vector<16x768xbf16>, vector<768x768xbf16>, vector<16x768xf32> -> vector<16x768xf32>
    %3 = math.tanh %2 : vector<16x768xf32>
    %4 = arith.truncf %3 : vector<16x768xf32> to vector<16x768xbf16>
    %c0_3 = arith.constant 0 : index
    %c0_4 = arith.constant 0 : index
    %5 = vector.load %arg4[%c0_3, %c0_4] : memref<768x256xbf16, #tpu.memory_space<vmem>>, vector<768x256xbf16>
    %cst_5 = arith.constant dense<0.000000e+00> : vector<16x256xf32>
    %6 = tpu.matmul %4, %5, %cst_5 {dimension_numbers = #tpu.dot_dimension_numbers<[1], [0], [0], [1], [0, 0, 1, 1], [], []>} : vector<16x768xbf16>, vector<768x256xbf16>, vector<16x256xf32> -> vector<16x256xf32>
    %c0_6 = arith.constant 0 : index
    %c0_7 = arith.constant 0 : index
    %7 = vector.load %arg2[%c0_6, %c0_7] : memref<16x128xbf16, #tpu.memory_space<vmem>>, vector<16x128xbf16>
    %c0_8 = arith.constant 0 : index
    %c0_9 = arith.constant 0 : index
    %8 = vector.load %arg5[%c0_8, %c0_9] : memref<128x256xbf16, #tpu.memory_space<vmem>>, vector<128x256xbf16>
    %cst_10 = arith.constant dense<0.000000e+00> : vector<16x256xf32>
    %9 = tpu.matmul %7, %8, %cst_10 {dimension_numbers = #tpu.dot_dimension_numbers<[1], [0], [0], [1], [0, 0, 1, 1], [], []>} : vector<16x128xbf16>, vector<128x256xbf16>, vector<16x256xf32> -> vector<16x256xf32>
    %10 = arith.addf %6, %9 : vector<16x256xf32>
    %c0_11 = arith.constant 0 : index
    %c0_12 = arith.constant 0 : index
    %11 = vector.load %arg6[%c0_11, %c0_12] : memref<1x256xf32, #tpu.memory_space<vmem>>, vector<1x256xf32>
    %12 = vector.broadcast %11 : vector<1x256xf32> to vector<16x256xf32>
    %13 = arith.addf %10, %12 : vector<16x256xf32>
    %cst_13 = arith.constant 0.000000e+00 : f32
    %14 = vector.broadcast %cst_13 : f32 to vector<16x256xf32>
    %15 = arith.maximumf %13, %14 : vector<16x256xf32>
    %16 = arith.truncf %15 : vector<16x256xf32> to vector<16x256xbf16>
    %c0_14 = arith.constant 0 : index
    %c0_15 = arith.constant 0 : index
    %17 = vector.load %arg7[%c0_14, %c0_15] : memref<256x128xbf16, #tpu.memory_space<vmem>>, vector<256x128xbf16>
    %cst_16 = arith.constant dense<0.000000e+00> : vector<16x128xf32>
    %18 = tpu.matmul %16, %17, %cst_16 {dimension_numbers = #tpu.dot_dimension_numbers<[1], [0], [0], [1], [0, 0, 1, 1], [], []>} : vector<16x256xbf16>, vector<256x128xbf16>, vector<16x128xf32> -> vector<16x128xf32>
    %c0_17 = arith.constant 0 : index
    %c0_18 = arith.constant 0 : index
    %19 = vector.load %arg8[%c0_17, %c0_18] : memref<1x128xf32, #tpu.memory_space<vmem>>, vector<1x128xf32>
    %20 = vector.broadcast %19 : vector<1x128xf32> to vector<16x128xf32>
    %21 = arith.addf %18, %20 : vector<16x128xf32>
    %cst_19 = arith.constant 0.000000e+00 : f32
    %22 = vector.broadcast %cst_19 : f32 to vector<16x128xf32>
    %23 = arith.maximumf %21, %22 : vector<16x128xf32>
    %24 = arith.truncf %23 : vector<16x128xf32> to vector<16x128xbf16>
    %c0_20 = arith.constant 0 : index
    %c0_21 = arith.constant 0 : index
    %25 = vector.load %arg9[%c0_20, %c0_21] : memref<128x128xbf16, #tpu.memory_space<vmem>>, vector<128x128xbf16>
    %cst_22 = arith.constant dense<0.000000e+00> : vector<16x128xf32>
    %26 = tpu.matmul %24, %25, %cst_22 {dimension_numbers = #tpu.dot_dimension_numbers<[1], [0], [0], [1], [0, 0, 1, 1], [], []>} : vector<16x128xbf16>, vector<128x128xbf16>, vector<16x128xf32> -> vector<16x128xf32>
    %c0_23 = arith.constant 0 : index
    %c0_24 = arith.constant 0 : index
    %27 = vector.load %arg10[%c0_23, %c0_24] : memref<1x128xf32, #tpu.memory_space<vmem>>, vector<1x128xf32>
    %28 = vector.broadcast %27 : vector<1x128xf32> to vector<16x128xf32>
    %29 = arith.addf %26, %28 : vector<16x128xf32>
    %c0_25 = arith.constant 0 : index
    %c0_26 = arith.constant 0 : index
    %30 = vector.load %arg11[%c0_25, %c0_26] : memref<16x128xf32, #tpu.memory_space<vmem>>, vector<16x128xf32>
    tpu.vector_store %arg11[%c0_25, %c0_26], %29 {strides = array<i32>} : memref<16x128xf32, #tpu.memory_space<vmem>>, vector<16x128xf32>,
    return
  }
  func.func @transform_0(%arg0: i32) -> (i32, i32) {
    %c0_i32 = arith.constant 0 : i32
    %c0_i32_0 = arith.constant 0 : i32
    return %arg0, %c0_i32 : i32, i32
  }
  func.func @transform_1(%arg0: i32) -> (i32, i32) {
    %c0_i32 = arith.constant 0 : i32
    %c0_i32_0 = arith.constant 0 : i32
    return %arg0, %c0_i32 : i32, i32
  }
  func.func @transform_2(%arg0: i32) -> (i32, i32) {
    %c0_i32 = arith.constant 0 : i32
    %c0_i32_0 = arith.constant 0 : i32
    %c0_i32_1 = arith.constant 0 : i32
    return %c0_i32, %c0_i32_0 : i32, i32
  }
  func.func @transform_3(%arg0: i32) -> (i32, i32) {
    %c0_i32 = arith.constant 0 : i32
    %c0_i32_0 = arith.constant 0 : i32
    %c0_i32_1 = arith.constant 0 : i32
    return %c0_i32, %c0_i32_0 : i32, i32
  }
  func.func @transform_4(%arg0: i32) -> (i32, i32) {
    %c0_i32 = arith.constant 0 : i32
    %c0_i32_0 = arith.constant 0 : i32
    %c0_i32_1 = arith.constant 0 : i32
    return %c0_i32, %c0_i32_0 : i32, i32
  }
  func.func @transform_5(%arg0: i32) -> (i32, i32) {
    %c0_i32 = arith.constant 0 : i32
    %c0_i32_0 = arith.constant 0 : i32
    %c0_i32_1 = arith.constant 0 : i32
    return %c0_i32, %c0_i32_0 : i32, i32
  }
  func.func @transform_6(%arg0: i32) -> (i32, i32) {
    %c0_i32 = arith.constant 0 : i32
    %c0_i32_0 = arith.constant 0 : i32
    %c0_i32_1 = arith.constant 0 : i32
    return %c0_i32, %c0_i32_0 : i32, i32
  }
  func.func @transform_7(%arg0: i32) -> (i32, i32) {
    %c0_i32 = arith.constant 0 : i32
    %c0_i32_0 = arith.constant 0 : i32
    %c0_i32_1 = arith.constant 0 : i32
    return %c0_i32, %c0_i32_0 : i32, i32
  }
  func.func @transform_8(%arg0: i32) -> (i32, i32) {
    %c0_i32 = arith.constant 0 : i32
    %c0_i32_0 = arith.constant 0 : i32
    %c0_i32_1 = arith.constant 0 : i32
    return %c0_i32, %c0_i32_0 : i32, i32
  }
  func.func @transform_9(%arg0: i32) -> (i32, i32) {
    %c0_i32 = arith.constant 0 : i32
    %c0_i32_0 = arith.constant 0 : i32
    %c0_i32_1 = arith.constant 0 : i32
    return %c0_i32, %c0_i32_0 : i32, i32
  }
  func.func @transform_10(%arg0: i32) -> (i32, i32) {
    %c0_i32 = arith.constant 0 : i32
    %c0_i32_0 = arith.constant 0 : i32
    return %arg0, %c0_i32 : i32, i32
  }
}

</mosaic_0001>

<llo_original>
// kernel: foursquare_forward.1
$region0: #{foursquare_forward.1}
  #allocation0 [shape = 'u32[]', space=smem, size = 0x4, offset = 0x4, fixed_abs, tag = 'smem constant byte address 0x4 - core index']
  #allocation1 [shape = 'u32[72,128]{1,0:T(1,128)}', space=vmem, size = 0x9000, scoped, tag = 'internal scratch']
  %s0 = inlined_call_operand.vmem [shape: bf16[16,768], index: 0, kind: input, shape index: {}]
  %s1 = inlined_call_operand.vmem [shape: bf16[16,128], index: 1, kind: input, shape index: {}]
  %s2 = inlined_call_operand.hbm [shape: bf16[768,768], index: 2, kind: input, shape index: {}]
  %s3 = inlined_call_operand.vmem [shape: bf16[768,256], index: 3, kind: input, shape index: {}]
  %s4 = inlined_call_operand.vmem [shape: bf16[128,256], index: 4, kind: input, shape index: {}]
  %s5 = inlined_call_operand.hbm [shape: f32[1,256], index: 5, kind: input, shape index: {}]
  %s6 = inlined_call_operand.vmem [shape: bf16[256,128], index: 6, kind: input, shape index: {}]
  %s7 = inlined_call_operand.hbm [shape: f32[1,128], index: 7, kind: input, shape index: {}]
  %s8 = inlined_call_operand.hbm [shape: bf16[128,128], index: 8, kind: input, shape index: {}]
  %s9 = inlined_call_operand.hbm [shape: f32[1,128], index: 9, kind: input, shape index: {}]
  %s10 = inlined_call_operand.vmem [shape: f32[16,128], index: 10, kind: output, shape index: {}]
  %s11 = sld [smem:[#allocation0]]
  $region70: #{foursquare_forward.1} parent=0
    _
  %s13 = ssub.s32 1, %s11
  %s14 = scalar_select 0, %s13, %s11
  $region1: #{foursquare_forward.1} parent=0
    #allocation2 [shape = 'u8[1179648]{0}', space=vmem, size = 0x120000, scoped, tag = 'input window, operand 2, single buffered']
    #allocation3 [shape = 's32[1]{0}', space=sflag, size = 0x4, scoped, tag = 'scoped memory for foursquare_forward.1']
    #allocation4 [shape = 'u8[1024]{0}', space=vmem, size = 0x400, scoped, tag = 'input window, operand 5, single buffered']
    #allocation5 [shape = 's32[1]{0}', space=sflag, size = 0x4, scoped, tag = 'scoped memory for foursquare_forward.1']
    #allocation6 [shape = 'u8[512]{0}', space=vmem, size = 0x400, scoped, tag = 'input window, operand 7, single buffered']
    #allocation7 [shape = 'u8[32768]{0}', space=vmem, size = 0x8000, scoped, tag = 'input window, operand 8, single buffered']
    #allocation8 [shape = 's32[1]{0}', space=sflag, size = 0x4, scoped, tag = 'scoped memory for foursquare_forward.1']
    #allocation9 [shape = 'u8[512]{0}', space=vmem, size = 0x400, scoped, tag = 'input window, operand 9, single buffered']
    %15 = vsyncpa [#allocation3], 0
    %16 = vsyncpa [#allocation5], 0
    %17 = vsyncpa [#allocation8], 0
    // Predicated region
    $region2: #{foursquare_forward.1} parent=1 // pred_check
      _
    $region3: #{foursquare_forward.1} parent=1 // pred_check_branch
      %19 = sbr.rel (0) target = $region5
    $region4: #{foursquare_forward.1} parent=1 // pred_region
      _
    $region5: #{foursquare_forward.1} parent=1 // pred_fallthru
      _
    // Predicated region
    $region6: #{foursquare_forward.1} parent=1 // pred_check
      _
    $region7: #{foursquare_forward.1} parent=1 // pred_check_branch
      %21 = sbr.rel (0) target = $region9
    $region8: #{foursquare_forward.1} parent=1 // pred_region
      _
    $region9: #{foursquare_forward.1} parent=1 // pred_fallthru
      _
    // Predicated region
    $region10: #{foursquare_forward.1} parent=1 // pred_check
      _
    $region11: #{foursquare_forward.1} parent=1 // pred_check_branch
      %23 = sbr.rel (0) target = $region13
    $region12: #{foursquare_forward.1} parent=1 // pred_region
      %25 = vsyncadd [#allocation3], 0
      %s26 = sshll.u32 %s2, 4
      %s27 = int_to_ptr.hbm [resolvable:$true] %s26
      %s28 = sshll.u32 [#allocation2], 4
      %s29 = int_to_ptr.vmem [resolvable:$true] %s28
      %34 = dma.hbm_to_vmem [thread:$0]  %s27, 36864, %s29, [#allocation3], 384, 384, 24
    $region13: #{foursquare_forward.1} parent=1 // pred_fallthru
      _
    // Predicated region
    $region14: #{foursquare_forward.1} parent=1 // pred_check
      _
    $region15: #{foursquare_forward.1} parent=1 // pred_check_branch
      %36 = sbr.rel (0) target = $region17
    $region16: #{foursquare_forward.1} parent=1 // pred_region
      _
    $region17: #{foursquare_forward.1} parent=1 // pred_fallthru
      _
    // Predicated region
    $region18: #{foursquare_forward.1} parent=1 // pred_check
      _
    $region19: #{foursquare_forward.1} parent=1 // pred_check_branch
      %38 = sbr.rel (0) target = $region21
    $region20: #{foursquare_forward.1} parent=1 // pred_region
      _
    $region21: #{foursquare_forward.1} parent=1 // pred_fallthru
      _
    // Predicated region
    $region22: #{foursquare_forward.1} parent=1 // pred_check
      _
    $region23: #{foursquare_forward.1} parent=1 // pred_check_branch
      %40 = sbr.rel (0) target = $region25
    $region24: #{foursquare_forward.1} parent=1 // pred_region
      %42 = vsyncadd [#allocation5], 0
      %s44 = sshll.u32 %s5, 4
      %s45 = int_to_ptr.hbm [resolvable:$true] %s44
      %s46 = sshll.u32 [#allocation4], 4
      %s47 = int_to_ptr.vmem [resolvable:$true] %s46
      %49 = dma.hbm_to_vmem [thread:$0]  %s45, 32, %s47, [#allocation5]
    $region25: #{foursquare_forward.1} parent=1 // pred_fallthru
      _
    // Predicated region
    $region26: #{foursquare_forward.1} parent=1 // pred_check
      _
    $region27: #{foursquare_forward.1} parent=1 // pred_check_branch
      %51 = sbr.rel (0) target = $region29
    $region28: #{foursquare_forward.1} parent=1 // pred_region
      _
    $region29: #{foursquare_forward.1} parent=1 // pred_fallthru
      _
    // Predicated region
    $region30: #{foursquare_forward.1} parent=1 // pred_check
      _
    $region31: #{foursquare_forward.1} parent=1 // pred_check_branch
      %53 = sbr.rel (0) target = $region33
    $region32: #{foursquare_forward.1} parent=1 // pred_region
      %55 = vsyncadd [#allocation5], 0
      %s57 = sshll.u32 %s7, 4
      %s58 = int_to_ptr.hbm [resolvable:$true] %s57
      %s59 = sshll.u32 [#allocation6], 4
      %s60 = int_to_ptr.vmem [resolvable:$true] %s59
      %62 = dma.hbm_to_vmem [thread:$0]  %s58, 16, %s60, [#allocation5]
    $region33: #{foursquare_forward.1} parent=1 // pred_fallthru
      _
    // Predicated region
    $region34: #{foursquare_forward.1} parent=1 // pred_check
      _
    $region35: #{foursquare_forward.1} parent=1 // pred_check_branch
      %64 = sbr.rel (0) target = $region37
    $region36: #{foursquare_forward.1} parent=1 // pred_region
      %66 = vsyncadd [#allocation8], 0
      %s67 = sshll.u32 %s8, 4
      %s68 = int_to_ptr.hbm [resolvable:$true] %s67
      %s69 = sshll.u32 [#allocation7], 4
      %s70 = int_to_ptr.vmem [resolvable:$true] %s69
      %75 = dma.hbm_to_vmem [thread:$0]  %s68, 1024, %s70, [#allocation8], 64, 64, 4
    $region37: #{foursquare_forward.1} parent=1 // pred_fallthru
      _
    // Predicated region
    $region38: #{foursquare_forward.1} parent=1 // pred_check
      _
    $region39: #{foursquare_forward.1} parent=1 // pred_check_branch
      %77 = sbr.rel (0) target = $region41
    $region40: #{foursquare_forward.1} parent=1 // pred_region
      %79 = vsyncadd [#allocation8], 0
      %s81 = sshll.u32 %s9, 4
      %s82 = int_to_ptr.hbm [resolvable:$true] %s81
      %s83 = sshll.u32 [#allocation9], 4
      %s84 = int_to_ptr.vmem [resolvable:$true] %s83
      %86 = dma.hbm_to_vmem [thread:$0]  %s82, 16, %s84, [#allocation8]
    $region41: #{foursquare_forward.1} parent=1 // pred_fallthru
      _
    // Predicated region
    $region42: #{foursquare_forward.1} parent=1 // pred_check
      _
    $region43: #{foursquare_forward.1} parent=1 // pred_check_branch
      %88 = sbr.rel (0) target = $region45
    $region44: #{foursquare_forward.1} parent=1 // pred_region
      %90 = dma.done [#allocation3], 36864
    $region45: #{foursquare_forward.1} parent=1 // pred_fallthru
      _
    // Predicated region
    $region46: #{foursquare_forward.1} parent=1 // pred_check
      _
    $region47: #{foursquare_forward.1} parent=1 // pred_check_branch
      %92 = sbr.rel (0) target = $region49
    $region48: #{foursquare_forward.1} parent=1 // pred_region
      %94 = dma.done [#allocation5], 32
    $region49: #{foursquare_forward.1} parent=1 // pred_fallthru
      _
    // Predicated region
    $region50: #{foursquare_forward.1} parent=1 // pred_check
      _
    $region51: #{foursquare_forward.1} parent=1 // pred_check_branch
      %96 = sbr.rel (0) target = $region53
    $region52: #{foursquare_forward.1} parent=1 // pred_region
      %98 = dma.done [#allocation5], 16
    $region53: #{foursquare_forward.1} parent=1 // pred_fallthru
      _
    // Predicated region
    $region54: #{foursquare_forward.1} parent=1 // pred_check
      _
    $region55: #{foursquare_forward.1} parent=1 // pred_check_branch
      %100 = sbr.rel (0) target = $region57
    $region56: #{foursquare_forward.1} parent=1 // pred_region
      %102 = dma.done [#allocation8], 1024
    $region57: #{foursquare_forward.1} parent=1 // pred_fallthru
      _
    // Predicated region
    $region58: #{foursquare_forward.1} parent=1 // pred_check
      _
    $region59: #{foursquare_forward.1} parent=1 // pred_check_branch
      %104 = sbr.rel (0) target = $region61
    $region60: #{foursquare_forward.1} parent=1 // pred_region
      %106 = dma.done [#allocation8], 16
    $region61: #{foursquare_forward.1} parent=1 // pred_fallthru
      _
    %v107 = vld [vmem:[%s0] sm:$0xff]
    %v108 = vld [vmem:[%s0 + $0x8] sm:$0xff]
    %v109 = vld [vmem:[%s0 + $0x10] sm:$0xff]
    %v110 = vld [vmem:[%s0 + $0x18] sm:$0xff]
    %v111 = vld [vmem:[%s0 + $0x20] sm:$0xff]
    %v112 = vld [vmem:[%s0 + $0x28] sm:$0xff]
    %v113 = vld [vmem:[#allocation2] sm:$0xff]
    %v114 = vld [vmem:[#allocation2 + $0x8] sm:$0xff]
    %v115 = vld [vmem:[#allocation2 + $0x10] sm:$0xff]
    %v116 = vld [vmem:[#allocation2 + $0x18] sm:$0xff]
    %v117 = vld [vmem:[#allocation2 + $0x20] sm:$0xff]
    %v118 = vld [vmem:[#allocation2 + $0x28] sm:$0xff]
    %v119 = vld [vmem:[#allocation2 + $0x30] sm:$0xff]
    %v120 = vld [vmem:[#allocation2 + $0x38] sm:$0xff]
    %v121 = vld [vmem:[#allocation2 + $0x40] sm:$0xff]
    %v122 = vld [vmem:[#allocation2 + $0x48] sm:$0xff]
    %v123 = vld [vmem:[#allocation2 + $0x50] sm:$0xff]
    %v124 = vld [vmem:[#allocation2 + $0x58] sm:$0xff]
    %v125 = vld [vmem:[#allocation2 + $0x60] sm:$0xff]
    %v126 = vld [vmem:[#allocation2 + $0x68] sm:$0xff]
    %v127 = vld [vmem:[#allocation2 + $0x70] sm:$0xff]
    %v128 = vld [vmem:[#allocation2 + $0x78] sm:$0xff]
    %v129 = vld [vmem:[#allocation2 + $0x80] sm:$0xff]
    %v130 = vld [vmem:[#allocation2 + $0x88] sm:$0xff]
    %v131 = vld [vmem:[#allocation2 + $0x90] sm:$0xff]
    %v132 = vld [vmem:[#allocation2 + $0x98] sm:$0xff]
    %v133 = vld [vmem:[#allocation2 + $0xa0] sm:$0xff]
    %v134 = vld [vmem:[#allocation2 + $0xa8] sm:$0xff]
    %v135 = vld [vmem:[#allocation2 + $0xb0] sm:$0xff]
    %v136 = vld [vmem:[#allocation2 + $0xb8] sm:$0xff]
    %v137 = vld [vmem:[#allocation2 + $0xc0] sm:$0xff]
    %v138 = vld [vmem:[#allocation2 + $0xc8] sm:$0xff]
    %v139 = vld [vmem:[#allocation2 + $0xd0] sm:$0xff]
    %v140 = vld [vmem:[#allocation2 + $0xd8] sm:$0xff]
    %v141 = vld [vmem:[#allocation2 + $0xe0] sm:$0xff]
    %v142 = vld [vmem:[#allocation2 + $0xe8] sm:$0xff]
    %v143 = vld [vmem:[#allocation2 + $0xf0] sm:$0xff]
    %v144 = vld [vmem:[#allocation2 + $0xf8] sm:$0xff]
    %v145 = vld [vmem:[#allocation2 + $0x100] sm:$0xff]
    %v146 = vld [vmem:[#allocation2 + $0x108] sm:$0xff]
    %v147 = vld [vmem:[#allocation2 + $0x110] sm:$0xff]
    %v148 = vld [vmem:[#allocation2 + $0x118] sm:$0xff]
    %v149 = vld [vmem:[#allocation2 + $0x120] sm:$0xff]
    %v150 = vld [vmem:[#allocation2 + $0x128] sm:$0xff]
    %v151 = vld [vmem:[#allocation2 + $0x130] sm:$0xff]
    %v152 = vld [vmem:[#allocation2 + $0x138] sm:$0xff]
    %v153 = vld [vmem:[#allocation2 + $0x140] sm:$0xff]
    %v154 = vld [vmem:[#allocation2 + $0x148] sm:$0xff]
    %v155 = vld [vmem:[#allocation2 + $0x150] sm:$0xff]
    %v156 = vld [vmem:[#allocation2 + $0x158] sm:$0xff]
    %v157 = vld [vmem:[#allocation2 + $0x160] sm:$0xff]
    %v158 = vld [vmem:[#allocation2 + $0x168] sm:$0xff]
    %v159 = vld [vmem:[#allocation2 + $0x170] sm:$0xff]
    %v160 = vld [vmem:[#allocation2 + $0x178] sm:$0xff]
    %v161 = vld [vmem:[#allocation2 + $0x180] sm:$0xff]
    %v162 = vld [vmem:[#allocation2 + $0x188] sm:$0xff]
    %v163 = vld [vmem:[#allocation2 + $0x190] sm:$0xff]
    %v164 = vld [vmem:[#allocation2 + $0x198] sm:$0xff]
    %v165 = vld [vmem:[#allocation2 + $0x1a0] sm:$0xff]
    %v166 = vld [vmem:[#allocation2 + $0x1a8] sm:$0xff]
    %v167 = vld [vmem:[#allocation2 + $0x1b0] sm:$0xff]
    %v168 = vld [vmem:[#allocation2 + $0x1b8] sm:$0xff]
    %v169 = vld [vmem:[#allocation2 + $0x1c0] sm:$0xff]
    %v170 = vld [vmem:[#allocation2 + $0x1c8] sm:$0xff]
    %v171 = vld [vmem:[#allocation2 + $0x1d0] sm:$0xff]
    %v172 = vld [vmem:[#allocation2 + $0x1d8] sm:$0xff]
    %v173 = vld [vmem:[#allocation2 + $0x1e0] sm:$0xff]
    %v174 = vld [vmem:[#allocation2 + $0x1e8] sm:$0xff]
    %v175 = vld [vmem:[#allocation2 + $0x1f0] sm:$0xff]
    %v176 = vld [vmem:[#allocation2 + $0x1f8] sm:$0xff]
    %v177 = vld [vmem:[#allocation2 + $0x200] sm:$0xff]
    %v178 = vld [vmem:[#allocation2 + $0x208] sm:$0xff]
    %v179 = vld [vmem:[#allocation2 + $0x210] sm:$0xff]
    %v180 = vld [vmem:[#allocation2 + $0x218] sm:$0xff]
    %v181 = vld [vmem:[#allocation2 + $0x220] sm:$0xff]
    %v182 = vld [vmem:[#allocation2 + $0x228] sm:$0xff]
    %v183 = vld [vmem:[#allocation2 + $0x230] sm:$0xff]
    %v184 = vld [vmem:[#allocation2 + $0x238] sm:$0xff]
    %v185 = vld [vmem:[#allocation2 + $0x240] sm:$0xff]
    %v186 = vld [vmem:[#allocation2 + $0x248] sm:$0xff]
    %v187 = vld [vmem:[#allocation2 + $0x250] sm:$0xff]
    %v188 = vld [vmem:[#allocation2 + $0x258] sm:$0xff]
    %v189 = vld [vmem:[#allocation2 + $0x260] sm:$0xff]
    %v190 = vld [vmem:[#allocation2 + $0x268] sm:$0xff]
    %v191 = vld [vmem:[#allocation2 + $0x270] sm:$0xff]
    %v192 = vld [vmem:[#allocation2 + $0x278] sm:$0xff]
    %v193 = vld [vmem:[#allocation2 + $0x280] sm:$0xff]
    %v194 = vld [vmem:[#allocation2 + $0x288] sm:$0xff]
    %v195 = vld [vmem:[#allocation2 + $0x290] sm:$0xff]
    %v196 = vld [vmem:[#allocation2 + $0x298] sm:$0xff]
    %v197 = vld [vmem:[#allocation2 + $0x2a0] sm:$0xff]
    %v198 = vld [vmem:[#allocation2 + $0x2a8] sm:$0xff]
    %v199 = vld [vmem:[#allocation2 + $0x2b0] sm:$0xff]
    %v200 = vld [vmem:[#allocation2 + $0x2b8] sm:$0xff]
    %v201 = vld [vmem:[#allocation2 + $0x2c0] sm:$0xff]
    %v202 = vld [vmem:[#allocation2 + $0x2c8] sm:$0xff]
    %v203 = vld [vmem:[#allocation2 + $0x2d0] sm:$0xff]
    %v204 = vld [vmem:[#allocation2 + $0x2d8] sm:$0xff]
    %v205 = vld [vmem:[#allocation2 + $0x2e0] sm:$0xff]
    %v206 = vld [vmem:[#allocation2 + $0x2e8] sm:$0xff]
    %v207 = vld [vmem:[#allocation2 + $0x2f0] sm:$0xff]
    %v208 = vld [vmem:[#allocation2 + $0x2f8] sm:$0xff]
    %v209 = vld [vmem:[#allocation2 + $0x300] sm:$0xff]
    %v210 = vld [vmem:[#allocation2 + $0x308] sm:$0xff]
    %v211 = vld [vmem:[#allocation2 + $0x310] sm:$0xff]
    %v212 = vld [vmem:[#allocation2 + $0x318] sm:$0xff]
    %v213 = vld [vmem:[#allocation2 + $0x320] sm:$0xff]
    %v214 = vld [vmem:[#allocation2 + $0x328] sm:$0xff]
    %v215 = vld [vmem:[#allocation2 + $0x330] sm:$0xff]
    %v216 = vld [vmem:[#allocation2 + $0x338] sm:$0xff]
    %v217 = vld [vmem:[#allocation2 + $0x340] sm:$0xff]
    %v218 = vld [vmem:[#allocation2 + $0x348] sm:$0xff]
    %v219 = vld [vmem:[#allocation2 + $0x350] sm:$0xff]
    %v220 = vld [vmem:[#allocation2 + $0x358] sm:$0xff]
    %v221 = vld [vmem:[#allocation2 + $0x360] sm:$0xff]
    %v222 = vld [vmem:[#allocation2 + $0x368] sm:$0xff]
    %v223 = vld [vmem:[#allocation2 + $0x370] sm:$0xff]
    %v224 = vld [vmem:[#allocation2 + $0x378] sm:$0xff]
    %v225 = vld [vmem:[#allocation2 + $0x380] sm:$0xff]
    %v226 = vld [vmem:[#allocation2 + $0x388] sm:$0xff]
    %v227 = vld [vmem:[#allocation2 + $0x390] sm:$0xff]
    %v228 = vld [vmem:[#allocation2 + $0x398] sm:$0xff]
    %v229 = vld [vmem:[#allocation2 + $0x3a0] sm:$0xff]
    %v230 = vld [vmem:[#allocation2 + $0x3a8] sm:$0xff]
    %v231 = vld [vmem:[#allocation2 + $0x3b0] sm:$0xff]
    %v232 = vld [vmem:[#allocation2 + $0x3b8] sm:$0xff]
    %v233 = vld [vmem:[#allocation2 + $0x3c0] sm:$0xff]
    %v234 = vld [vmem:[#allocation2 + $0x3c8] sm:$0xff]
    %v235 = vld [vmem:[#allocation2 + $0x3d0] sm:$0xff]
    %v236 = vld [vmem:[#allocation2 + $0x3d8] sm:$0xff]
    %v237 = vld [vmem:[#allocation2 + $0x3e0] sm:$0xff]
    %v238 = vld [vmem:[#allocation2 + $0x3e8] sm:$0xff]
    %v239 = vld [vmem:[#allocation2 + $0x3f0] sm:$0xff]
    %v240 = vld [vmem:[#allocation2 + $0x3f8] sm:$0xff]
    %v241 = vld [vmem:[#allocation2 + $0x400] sm:$0xff]
    %v242 = vld [vmem:[#allocation2 + $0x408] sm:$0xff]
    %v243 = vld [vmem:[#allocation2 + $0x410] sm:$0xff]
    %v244 = vld [vmem:[#allocation2 + $0x418] sm:$0xff]
    %v245 = vld [vmem:[#allocation2 + $0x420] sm:$0xff]
    %v246 = vld [vmem:[#allocation2 + $0x428] sm:$0xff]
    %v247 = vld [vmem:[#allocation2 + $0x430] sm:$0xff]
    %v248 = vld [vmem:[#allocation2 + $0x438] sm:$0xff]
    %v249 = vld [vmem:[#allocation2 + $0x440] sm:$0xff]
    %v250 = vld [vmem:[#allocation2 + $0x448] sm:$0xff]
    %v251 = vld [vmem:[#allocation2 + $0x450] sm:$0xff]
    %v252 = vld [vmem:[#allocation2 + $0x458] sm:$0xff]
    %v253 = vld [vmem:[#allocation2 + $0x460] sm:$0xff]
    %v254 = vld [vmem:[#allocation2 + $0x468] sm:$0xff]
    %v255 = vld [vmem:[#allocation2 + $0x470] sm:$0xff]
    %v256 = vld [vmem:[#allocation2 + $0x478] sm:$0xff]
    %v257 = vld [vmem:[#allocation2 + $0x480] sm:$0xff]
    %v258 = vld [vmem:[#allocation2 + $0x488] sm:$0xff]
    %v259 = vld [vmem:[#allocation2 + $0x490] sm:$0xff]
    %v260 = vld [vmem:[#allocation2 + $0x498] sm:$0xff]
    %v261 = vld [vmem:[#allocation2 + $0x4a0] sm:$0xff]
    %v262 = vld [vmem:[#allocation2 + $0x4a8] sm:$0xff]
    %v263 = vld [vmem:[#allocation2 + $0x4b0] sm:$0xff]
    %v264 = vld [vmem:[#allocation2 + $0x4b8] sm:$0xff]
    %v265 = vld [vmem:[#allocation2 + $0x4c0] sm:$0xff]
    %v266 = vld [vmem:[#allocation2 + $0x4c8] sm:$0xff]
    %v267 = vld [vmem:[#allocation2 + $0x4d0] sm:$0xff]
    %v268 = vld [vmem:[#allocation2 + $0x4d8] sm:$0xff]
    %v269 = vld [vmem:[#allocation2 + $0x4e0] sm:$0xff]
    %v270 = vld [vmem:[#allocation2 + $0x4e8] sm:$0xff]
    %v271 = vld [vmem:[#allocation2 + $0x4f0] sm:$0xff]
    %v272 = vld [vmem:[#allocation2 + $0x4f8] sm:$0xff]
    %v273 = vld [vmem:[#allocation2 + $0x500] sm:$0xff]
    %v274 = vld [vmem:[#allocation2 + $0x508] sm:$0xff]
    %v275 = vld [vmem:[#allocation2 + $0x510] sm:$0xff]
    %v276 = vld [vmem:[#allocation2 + $0x518] sm:$0xff]
    %v277 = vld [vmem:[#allocation2 + $0x520] sm:$0xff]
    %v278 = vld [vmem:[#allocation2 + $0x528] sm:$0xff]
    %v279 = vld [vmem:[#allocation2 + $0x530] sm:$0xff]
    %v280 = vld [vmem:[#allocation2 + $0x538] sm:$0xff]
    %v281 = vld [vmem:[#allocation2 + $0x540] sm:$0xff]
    %v282 = vld [vmem:[#allocation2 + $0x548] sm:$0xff]
    %v283 = vld [vmem:[#allocation2 + $0x550] sm:$0xff]
    %v284 = vld [vmem:[#allocation2 + $0x558] sm:$0xff]
    %v285 = vld [vmem:[#allocation2 + $0x560] sm:$0xff]
    %v286 = vld [vmem:[#allocation2 + $0x568] sm:$0xff]
    %v287 = vld [vmem:[#allocation2 + $0x570] sm:$0xff]
    %v288 = vld [vmem:[#allocation2 + $0x578] sm:$0xff]
    %v289 = vld [vmem:[#allocation2 + $0x580] sm:$0xff]
    %v290 = vld [vmem:[#allocation2 + $0x588] sm:$0xff]
    %v291 = vld [vmem:[#allocation2 + $0x590] sm:$0xff]
    %v292 = vld [vmem:[#allocation2 + $0x598] sm:$0xff]
    %v293 = vld [vmem:[#allocation2 + $0x5a0] sm:$0xff]
    %v294 = vld [vmem:[#allocation2 + $0x5a8] sm:$0xff]
    %v295 = vld [vmem:[#allocation2 + $0x5b0] sm:$0xff]
    %v296 = vld [vmem:[#allocation2 + $0x5b8] sm:$0xff]
    %v297 = vld [vmem:[#allocation2 + $0x5c0] sm:$0xff]
    %v298 = vld [vmem:[#allocation2 + $0x5c8] sm:$0xff]
    %v299 = vld [vmem:[#allocation2 + $0x5d0] sm:$0xff]
    %v300 = vld [vmem:[#allocation2 + $0x5d8] sm:$0xff]
    %v301 = vld [vmem:[#allocation2 + $0x5e0] sm:$0xff]
    %v302 = vld [vmem:[#allocation2 + $0x5e8] sm:$0xff]
    %v303 = vld [vmem:[#allocation2 + $0x5f0] sm:$0xff]
    %v304 = vld [vmem:[#allocation2 + $0x5f8] sm:$0xff]
    %v305 = vld [vmem:[#allocation2 + $0x600] sm:$0xff]
    %v306 = vld [vmem:[#allocation2 + $0x608] sm:$0xff]
    %v307 = vld [vmem:[#allocation2 + $0x610] sm:$0xff]
    %v308 = vld [vmem:[#allocation2 + $0x618] sm:$0xff]
    %v309 = vld [vmem:[#allocation2 + $0x620] sm:$0xff]
    %v310 = vld [vmem:[#allocation2 + $0x628] sm:$0xff]
    %v311 = vld [vmem:[#allocation2 + $0x630] sm:$0xff]
    %v312 = vld [vmem:[#allocation2 + $0x638] sm:$0xff]
    %v313 = vld [vmem:[#allocation2 + $0x640] sm:$0xff]
    %v314 = vld [vmem:[#allocation2 + $0x648] sm:$0xff]
    %v315 = vld [vmem:[#allocation2 + $0x650] sm:$0xff]
    %v316 = vld [vmem:[#allocation2 + $0x658] sm:$0xff]
    %v317 = vld [vmem:[#allocation2 + $0x660] sm:$0xff]
    %v318 = vld [vmem:[#allocation2 + $0x668] sm:$0xff]
    %v319 = vld [vmem:[#allocation2 + $0x670] sm:$0xff]
    %v320 = vld [vmem:[#allocation2 + $0x678] sm:$0xff]
    %v321 = vld [vmem:[#allocation2 + $0x680] sm:$0xff]
    %v322 = vld [vmem:[#allocation2 + $0x688] sm:$0xff]
    %v323 = vld [vmem:[#allocation2 + $0x690] sm:$0xff]
    %v324 = vld [vmem:[#allocation2 + $0x698] sm:$0xff]
    %v325 = vld [vmem:[#allocation2 + $0x6a0] sm:$0xff]
    %v326 = vld [vmem:[#allocation2 + $0x6a8] sm:$0xff]
    %v327 = vld [vmem:[#allocation2 + $0x6b0] sm:$0xff]
    %v328 = vld [vmem:[#allocation2 + $0x6b8] sm:$0xff]
    %v329 = vld [vmem:[#allocation2 + $0x6c0] sm:$0xff]
    %v330 = vld [vmem:[#allocation2 + $0x6c8] sm:$0xff]
    %v331 = vld [vmem:[#allocation2 + $0x6d0] sm:$0xff]
    %v332 = vld [vmem:[#allocation2 + $0x6d8] sm:$0xff]
    %v333 = vld [vmem:[#allocation2 + $0x6e0] sm:$0xff]
    %v334 = vld [vmem:[#allocation2 + $0x6e8] sm:$0xff]
    %v335 = vld [vmem:[#allocation2 + $0x6f0] sm:$0xff]
    %v336 = vld [vmem:[#allocation2 + $0x6f8] sm:$0xff]
    %v337 = vld [vmem:[#allocation2 + $0x700] sm:$0xff]
    %v338 = vld [vmem:[#allocation2 + $0x708] sm:$0xff]
    %v339 = vld [vmem:[#allocation2 + $0x710] sm:$0xff]
    %v340 = vld [vmem:[#allocation2 + $0x718] sm:$0xff]
    %v341 = vld [vmem:[#allocation2 + $0x720] sm:$0xff]
    %v342 = vld [vmem:[#allocation2 + $0x728] sm:$0xff]
    %v343 = vld [vmem:[#allocation2 + $0x730] sm:$0xff]
    %v344 = vld [vmem:[#allocation2 + $0x738] sm:$0xff]
    %v345 = vld [vmem:[#allocation2 + $0x740] sm:$0xff]
    %v346 = vld [vmem:[#allocation2 + $0x748] sm:$0xff]
    %v347 = vld [vmem:[#allocation2 + $0x750] sm:$0xff]
    %v348 = vld [vmem:[#allocation2 + $0x758] sm:$0xff]
    %v349 = vld [vmem:[#allocation2 + $0x760] sm:$0xff]
    %v350 = vld [vmem:[#allocation2 + $0x768] sm:$0xff]
    %v351 = vld [vmem:[#allocation2 + $0x770] sm:$0xff]
    %v352 = vld [vmem:[#allocation2 + $0x778] sm:$0xff]
    %v353 = vld [vmem:[#allocation2 + $0x780] sm:$0xff]
    %v354 = vld [vmem:[#allocation2 + $0x788] sm:$0xff]
    %v355 = vld [vmem:[#allocation2 + $0x790] sm:$0xff]
    %v356 = vld [vmem:[#allocation2 + $0x798] sm:$0xff]
    %v357 = vld [vmem:[#allocation2 + $0x7a0] sm:$0xff]
    %v358 = vld [vmem:[#allocation2 + $0x7a8] sm:$0xff]
    %v359 = vld [vmem:[#allocation2 + $0x7b0] sm:$0xff]
    %v360 = vld [vmem:[#allocation2 + $0x7b8] sm:$0xff]
    %v361 = vld [vmem:[#allocation2 + $0x7c0] sm:$0xff]
    %v362 = vld [vmem:[#allocation2 + $0x7c8] sm:$0xff]
    %v363 = vld [vmem:[#allocation2 + $0x7d0] sm:$0xff]
    %v364 = vld [vmem:[#allocation2 + $0x7d8] sm:$0xff]
    %v365 = vld [vmem:[#allocation2 + $0x7e0] sm:$0xff]
    %v366 = vld [vmem:[#allocation2 + $0x7e8] sm:$0xff]
    %v367 = vld [vmem:[#allocation2 + $0x7f0] sm:$0xff]
    %v368 = vld [vmem:[#allocation2 + $0x7f8] sm:$0xff]
    %v369 = vld [vmem:[#allocation2 + $0x800] sm:$0xff]
    %v370 = vld [vmem:[#allocation2 + $0x808] sm:$0xff]
    %v371 = vld [vmem:[#allocation2 + $0x810] sm:$0xff]
    %v372 = vld [vmem:[#allocation2 + $0x818] sm:$0xff]
    %v373 = vld [vmem:[#allocation2 + $0x820] sm:$0xff]
    %v374 = vld [vmem:[#allocation2 + $0x828] sm:$0xff]
    %v375 = vld [vmem:[#allocation2 + $0x830] sm:$0xff]
    %v376 = vld [vmem:[#allocation2 + $0x838] sm:$0xff]
    %v377 = vld [vmem:[#allocation2 + $0x840] sm:$0xff]
    %v378 = vld [vmem:[#allocation2 + $0x848] sm:$0xff]
    %v379 = vld [vmem:[#allocation2 + $0x850] sm:$0xff]
    %v380 = vld [vmem:[#allocation2 + $0x858] sm:$0xff]
    %v381 = vld [vmem:[#allocation2 + $0x860] sm:$0xff]
    %v382 = vld [vmem:[#allocation2 + $0x868] sm:$0xff]
    %v383 = vld [vmem:[#allocation2 + $0x870] sm:$0xff]
    %v384 = vld [vmem:[#allocation2 + $0x878] sm:$0xff]
    %v385 = vld [vmem:[#allocation2 + $0x880] sm:$0xff]
    %v386 = vld [vmem:[#allocation2 + $0x888] sm:$0xff]
    %v387 = vld [vmem:[#allocation2 + $0x890] sm:$0xff]
    %v388 = vld [vmem:[#allocation2 + $0x898] sm:$0xff]
    %v389 = vld [vmem:[#allocation2 + $0x8a0] sm:$0xff]
    %v390 = vld [vmem:[#allocation2 + $0x8a8] sm:$0xff]
    %v391 = vld [vmem:[#allocation2 + $0x8b0] sm:$0xff]
    %v392 = vld [vmem:[#allocation2 + $0x8b8] sm:$0xff]
    %v393 = vld [vmem:[#allocation2 + $0x8c0] sm:$0xff]
    %v394 = vld [vmem:[#allocation2 + $0x8c8] sm:$0xff]
    %v395 = vld [vmem:[#allocation2 + $0x8d0] sm:$0xff]
    %v396 = vld [vmem:[#allocation2 + $0x8d8] sm:$0xff]
    %v397 = vld [vmem:[#allocation2 + $0x8e0] sm:$0xff]
    %v398 = vld [vmem:[#allocation2 + $0x8e8] sm:$0xff]
    %v399 = vld [vmem:[#allocation2 + $0x8f0] sm:$0xff]
    %v400 = vld [vmem:[#allocation2 + $0x8f8] sm:$0xff]
    %v407 = vunpack.c.l.b16 %v107
    %v408 = vunpack.c.h.b16 %v107
    %v409 = vunpack.c.l.b16 %v108
    %v410 = vunpack.c.h.b16 %v108
    %v411 = vunpack.c.l.b16 %v109
    %v412 = vunpack.c.h.b16 %v109
    %v413 = vunpack.c.l.b16 %v110
    %v414 = vunpack.c.h.b16 %v110
    %v415 = vunpack.c.l.b16 %v111
    %v416 = vunpack.c.h.b16 %v111
    %v417 = vunpack.c.l.b16 %v112
    %v418 = vunpack.c.h.b16 %v112
    %v419 = vpack.c.b16 %v413, %v407
    %v420 = vpack.c.b16 %v414, %v408
    %v421 = vpack.c.b16 %v415, %v409
    %v422 = vpack.c.b16 %v416, %v410
    %v423 = vpack.c.b16 %v417, %v411
    %v424 = vpack.c.b16 %v418, %v412
    %v719 = vunpack.c.l.b16 %v113
    %v720 = vunpack.c.h.b16 %v113
    %v721 = vunpack.c.l.b16 %v114
    %v722 = vunpack.c.h.b16 %v114
    %v723 = vunpack.c.l.b16 %v115
    %v724 = vunpack.c.h.b16 %v115
    %v725 = vunpack.c.l.b16 %v116
    %v726 = vunpack.c.h.b16 %v116
    %v727 = vunpack.c.l.b16 %v117
    %v728 = vunpack.c.h.b16 %v117
    %v729 = vunpack.c.l.b16 %v118
    %v730 = vunpack.c.h.b16 %v118
    %v731 = vunpack.c.l.b16 %v119
    %v732 = vunpack.c.h.b16 %v119
    %v733 = vunpack.c.l.b16 %v120
    %v734 = vunpack.c.h.b16 %v120
    %v735 = vunpack.c.l.b16 %v121
    %v736 = vunpack.c.h.b16 %v121
    %v737 = vunpack.c.l.b16 %v122
    %v738 = vunpack.c.h.b16 %v122
    %v739 = vunpack.c.l.b16 %v123
    %v740 = vunpack.c.h.b16 %v123
    %v741 = vunpack.c.l.b16 %v124
    %v742 = vunpack.c.h.b16 %v124
    %v743 = vunpack.c.l.b16 %v125
    %v744 = vunpack.c.h.b16 %v125
    %v745 = vunpack.c.l.b16 %v126
    %v746 = vunpack.c.h.b16 %v126
    %v747 = vunpack.c.l.b16 %v127
    %v748 = vunpack.c.h.b16 %v127
    %v749 = vunpack.c.l.b16 %v128
    %v750 = vunpack.c.h.b16 %v128
    %v751 = vunpack.c.l.b16 %v129
    %v752 = vunpack.c.h.b16 %v129
    %v753 = vunpack.c.l.b16 %v130
    %v754 = vunpack.c.h.b16 %v130
    %v755 = vunpack.c.l.b16 %v131
    %v756 = vunpack.c.h.b16 %v131
    %v757 = vunpack.c.l.b16 %v132
    %v758 = vunpack.c.h.b16 %v132
    %v759 = vunpack.c.l.b16 %v133
    %v760 = vunpack.c.h.b16 %v133
    %v761 = vunpack.c.l.b16 %v134
    %v762 = vunpack.c.h.b16 %v134
    %v763 = vunpack.c.l.b16 %v135
    %v764 = vunpack.c.h.b16 %v135
    %v765 = vunpack.c.l.b16 %v136
    %v766 = vunpack.c.h.b16 %v136
    %v767 = vunpack.c.l.b16 %v137
    %v768 = vunpack.c.h.b16 %v137
    %v769 = vunpack.c.l.b16 %v138
    %v770 = vunpack.c.h.b16 %v138
    %v771 = vunpack.c.l.b16 %v139
    %v772 = vunpack.c.h.b16 %v139
    %v773 = vunpack.c.l.b16 %v140
    %v774 = vunpack.c.h.b16 %v140
    %v775 = vunpack.c.l.b16 %v141
    %v776 = vunpack.c.h.b16 %v141
    %v777 = vunpack.c.l.b16 %v142
    %v778 = vunpack.c.h.b16 %v142
    %v779 = vunpack.c.l.b16 %v143
    %v780 = vunpack.c.h.b16 %v143
    %v781 = vunpack.c.l.b16 %v144
    %v782 = vunpack.c.h.b16 %v144
    %v783 = vunpack.c.l.b16 %v145
    %v784 = vunpack.c.h.b16 %v145
    %v785 = vunpack.c.l.b16 %v146
    %v786 = vunpack.c.h.b16 %v146
    %v787 = vunpack.c.l.b16 %v147
    %v788 = vunpack.c.h.b16 %v147
    %v789 = vunpack.c.l.b16 %v148
    %v790 = vunpack.c.h.b16 %v148
    %v791 = vunpack.c.l.b16 %v149
    %v792 = vunpack.c.h.b16 %v149
    %v793 = vunpack.c.l.b16 %v150
    %v794 = vunpack.c.h.b16 %v150
    %v795 = vunpack.c.l.b16 %v151
    %v796 = vunpack.c.h.b16 %v151
    %v797 = vunpack.c.l.b16 %v152
    %v798 = vunpack.c.h.b16 %v152
    %v799 = vunpack.c.l.b16 %v153
    %v800 = vunpack.c.h.b16 %v153
    %v801 = vunpack.c.l.b16 %v154
    %v802 = vunpack.c.h.b16 %v154
    %v803 = vunpack.c.l.b16 %v155
    %v804 = vunpack.c.h.b16 %v155
    %v805 = vunpack.c.l.b16 %v156
    %v806 = vunpack.c.h.b16 %v156
    %v807 = vunpack.c.l.b16 %v157
    %v808 = vunpack.c.h.b16 %v157
    %v809 = vunpack.c.l.b16 %v158
    %v810 = vunpack.c.h.b16 %v158
    %v811 = vunpack.c.l.b16 %v159
    %v812 = vunpack.c.h.b16 %v159
    %v813 = vunpack.c.l.b16 %v160
    %v814 = vunpack.c.h.b16 %v160
    %v815 = vunpack.c.l.b16 %v161
    %v816 = vunpack.c.h.b16 %v161
    %v817 = vunpack.c.l.b16 %v162
    %v818 = vunpack.c.h.b16 %v162
    %v819 = vunpack.c.l.b16 %v163
    %v820 = vunpack.c.h.b16 %v163
    %v821 = vunpack.c.l.b16 %v164
    %v822 = vunpack.c.h.b16 %v164
    %v823 = vunpack.c.l.b16 %v165
    %v824 = vunpack.c.h.b16 %v165
    %v825 = vunpack.c.l.b16 %v166
    %v826 = vunpack.c.h.b16 %v166
    %v827 = vunpack.c.l.b16 %v167
    %v828 = vunpack.c.h.b16 %v167
    %v829 = vunpack.c.l.b16 %v168
    %v830 = vunpack.c.h.b16 %v168
    %v831 = vunpack.c.l.b16 %v169
    %v832 = vunpack.c.h.b16 %v169
    %v833 = vunpack.c.l.b16 %v170
    %v834 = vunpack.c.h.b16 %v170
    %v835 = vunpack.c.l.b16 %v171
    %v836 = vunpack.c.h.b16 %v171
    %v837 = vunpack.c.l.b16 %v172
    %v838 = vunpack.c.h.b16 %v172
    %v839 = vunpack.c.l.b16 %v173
    %v840 = vunpack.c.h.b16 %v173
    %v841 = vunpack.c.l.b16 %v174
    %v842 = vunpack.c.h.b16 %v174
    %v843 = vunpack.c.l.b16 %v175
    %v844 = vunpack.c.h.b16 %v175
    %v845 = vunpack.c.l.b16 %v176
    %v846 = vunpack.c.h.b16 %v176
    %v847 = vunpack.c.l.b16 %v177
    %v848 = vunpack.c.h.b16 %v177
    %v849 = vunpack.c.l.b16 %v178
    %v850 = vunpack.c.h.b16 %v178
    %v851 = vunpack.c.l.b16 %v179
    %v852 = vunpack.c.h.b16 %v179
    %v853 = vunpack.c.l.b16 %v180
    %v854 = vunpack.c.h.b16 %v180
    %v855 = vunpack.c.l.b16 %v181
    %v856 = vunpack.c.h.b16 %v181
    %v857 = vunpack.c.l.b16 %v182
    %v858 = vunpack.c.h.b16 %v182
    %v859 = vunpack.c.l.b16 %v183
    %v860 = vunpack.c.h.b16 %v183
    %v861 = vunpack.c.l.b16 %v184
    %v862 = vunpack.c.h.b16 %v184
    %v863 = vunpack.c.l.b16 %v185
    %v864 = vunpack.c.h.b16 %v185
    %v865 = vunpack.c.l.b16 %v186
    %v866 = vunpack.c.h.b16 %v186
    %v867 = vunpack.c.l.b16 %v187
    %v868 = vunpack.c.h.b16 %v187
    %v869 = vunpack.c.l.b16 %v188
    %v870 = vunpack.c.h.b16 %v188
    %v871 = vunpack.c.l.b16 %v189
    %v872 = vunpack.c.h.b16 %v189
    %v873 = vunpack.c.l.b16 %v190
    %v874 = vunpack.c.h.b16 %v190
    %v875 = vunpack.c.l.b16 %v191
    %v876 = vunpack.c.h.b16 %v191
    %v877 = vunpack.c.l.b16 %v192
    %v878 = vunpack.c.h.b16 %v192
    %v879 = vunpack.c.l.b16 %v193
    %v880 = vunpack.c.h.b16 %v193
    %v881 = vunpack.c.l.b16 %v194
    %v882 = vunpack.c.h.b16 %v194
    %v883 = vunpack.c.l.b16 %v195
    %v884 = vunpack.c.h.b16 %v195
    %v885 = vunpack.c.l.b16 %v196
    %v886 = vunpack.c.h.b16 %v196
    %v887 = vunpack.c.l.b16 %v197
    %v888 = vunpack.c.h.b16 %v197
    %v889 = vunpack.c.l.b16 %v198
    %v890 = vunpack.c.h.b16 %v198
    %v891 = vunpack.c.l.b16 %v199
    %v892 = vunpack.c.h.b16 %v199
    %v893 = vunpack.c.l.b16 %v200
    %v894 = vunpack.c.h.b16 %v200
    %v895 = vunpack.c.l.b16 %v201
    %v896 = vunpack.c.h.b16 %v201
    %v897 = vunpack.c.l.b16 %v202
    %v898 = vunpack.c.h.b16 %v202
    %v899 = vunpack.c.l.b16 %v203
    %v900 = vunpack.c.h.b16 %v203
    %v901 = vunpack.c.l.b16 %v204
    %v902 = vunpack.c.h.b16 %v204
    %v903 = vunpack.c.l.b16 %v205
    %v904 = vunpack.c.h.b16 %v205
    %v905 = vunpack.c.l.b16 %v206
    %v906 = vunpack.c.h.b16 %v206
    %v907 = vunpack.c.l.b16 %v207
    %v908 = vunpack.c.h.b16 %v207
    %v909 = vunpack.c.l.b16 %v208
    %v910 = vunpack.c.h.b16 %v208
    %v911 = vunpack.c.l.b16 %v209
    %v912 = vunpack.c.h.b16 %v209
    %v913 = vunpack.c.l.b16 %v210
    %v914 = vunpack.c.h.b16 %v210
    %v915 = vunpack.c.l.b16 %v211
    %v916 = vunpack.c.h.b16 %v211
    %v917 = vunpack.c.l.b16 %v212
    %v918 = vunpack.c.h.b16 %v212
    %v919 = vunpack.c.l.b16 %v213
    %v920 = vunpack.c.h.b16 %v213
    %v921 = vunpack.c.l.b16 %v214
    %v922 = vunpack.c.h.b16 %v214
    %v923 = vunpack.c.l.b16 %v215
    %v924 = vunpack.c.h.b16 %v215
    %v925 = vunpack.c.l.b16 %v216
    %v926 = vunpack.c.h.b16 %v216
    %v927 = vunpack.c.l.b16 %v217
    %v928 = vunpack.c.h.b16 %v217
    %v929 = vunpack.c.l.b16 %v218
    %v930 = vunpack.c.h.b16 %v218
    %v931 = vunpack.c.l.b16 %v219
    %v932 = vunpack.c.h.b16 %v219
    %v933 = vunpack.c.l.b16 %v220
    %v934 = vunpack.c.h.b16 %v220
    %v935 = vunpack.c.l.b16 %v221
    %v936 = vunpack.c.h.b16 %v221
    %v937 = vunpack.c.l.b16 %v222
    %v938 = vunpack.c.h.b16 %v222
    %v939 = vunpack.c.l.b16 %v223
    %v940 = vunpack.c.h.b16 %v223
    %v941 = vunpack.c.l.b16 %v224
    %v942 = vunpack.c.h.b16 %v224
    %v943 = vunpack.c.l.b16 %v225
    %v944 = vunpack.c.h.b16 %v225
    %v945 = vunpack.c.l.b16 %v226
    %v946 = vunpack.c.h.b16 %v226
    %v947 = vunpack.c.l.b16 %v227
    %v948 = vunpack.c.h.b16 %v227
    %v949 = vunpack.c.l.b16 %v228
    %v950 = vunpack.c.h.b16 %v228
    %v951 = vunpack.c.l.b16 %v229
    %v952 = vunpack.c.h.b16 %v229
    %v953 = vunpack.c.l.b16 %v230
    %v954 = vunpack.c.h.b16 %v230
    %v955 = vunpack.c.l.b16 %v231
    %v956 = vunpack.c.h.b16 %v231
    %v957 = vunpack.c.l.b16 %v232
    %v958 = vunpack.c.h.b16 %v232
    %v959 = vunpack.c.l.b16 %v233
    %v960 = vunpack.c.h.b16 %v233
    %v961 = vunpack.c.l.b16 %v234
    %v962 = vunpack.c.h.b16 %v234
    %v963 = vunpack.c.l.b16 %v235
    %v964 = vunpack.c.h.b16 %v235
    %v965 = vunpack.c.l.b16 %v236
    %v966 = vunpack.c.h.b16 %v236
    %v967 = vunpack.c.l.b16 %v237
    %v968 = vunpack.c.h.b16 %v237
    %v969 = vunpack.c.l.b16 %v238
    %v970 = vunpack.c.h.b16 %v238
    %v971 = vunpack.c.l.b16 %v239
    %v972 = vunpack.c.h.b16 %v239
    %v973 = vunpack.c.l.b16 %v240
    %v974 = vunpack.c.h.b16 %v240
    %v975 = vunpack.c.l.b16 %v241
    %v976 = vunpack.c.h.b16 %v241
    %v977 = vunpack.c.l.b16 %v242
    %v978 = vunpack.c.h.b16 %v242
    %v979 = vunpack.c.l.b16 %v243
    %v980 = vunpack.c.h.b16 %v243
    %v981 = vunpack.c.l.b16 %v244
    %v982 = vunpack.c.h.b16 %v244
    %v983 = vunpack.c.l.b16 %v245
    %v984 = vunpack.c.h.b16 %v245
    %v985 = vunpack.c.l.b16 %v246
    %v986 = vunpack.c.h.b16 %v246
    %v987 = vunpack.c.l.b16 %v247
    %v988 = vunpack.c.h.b16 %v247
    %v989 = vunpack.c.l.b16 %v248
    %v990 = vunpack.c.h.b16 %v248
    %v991 = vunpack.c.l.b16 %v249
    %v992 = vunpack.c.h.b16 %v249
    %v993 = vunpack.c.l.b16 %v250
    %v994 = vunpack.c.h.b16 %v250
    %v995 = vunpack.c.l.b16 %v251
    %v996 = vunpack.c.h.b16 %v251
    %v997 = vunpack.c.l.b16 %v252
    %v998 = vunpack.c.h.b16 %v252
    %v999 = vunpack.c.l.b16 %v253
    %v1000 = vunpack.c.h.b16 %v253
    %v1001 = vunpack.c.l.b16 %v254
    %v1002 = vunpack.c.h.b16 %v254
    %v1003 = vunpack.c.l.b16 %v255
    %v1004 = vunpack.c.h.b16 %v255
    %v1005 = vunpack.c.l.b16 %v256
    %v1006 = vunpack.c.h.b16 %v256
    %v1007 = vunpack.c.l.b16 %v257
    %v1008 = vunpack.c.h.b16 %v257
    %v1009 = vunpack.c.l.b16 %v258
    %v1010 = vunpack.c.h.b16 %v258
    %v1011 = vunpack.c.l.b16 %v259
    %v1012 = vunpack.c.h.b16 %v259
    %v1013 = vunpack.c.l.b16 %v260
    %v1014 = vunpack.c.h.b16 %v260
    %v1015 = vunpack.c.l.b16 %v261
    %v1016 = vunpack.c.h.b16 %v261
    %v1017 = vunpack.c.l.b16 %v262
    %v1018 = vunpack.c.h.b16 %v262
    %v1019 = vunpack.c.l.b16 %v263
    %v1020 = vunpack.c.h.b16 %v263
    %v1021 = vunpack.c.l.b16 %v264
    %v1022 = vunpack.c.h.b16 %v264
    %v1023 = vunpack.c.l.b16 %v265
    %v1024 = vunpack.c.h.b16 %v265
    %v1025 = vunpack.c.l.b16 %v266
    %v1026 = vunpack.c.h.b16 %v266
    %v1027 = vunpack.c.l.b16 %v267
    %v1028 = vunpack.c.h.b16 %v267
    %v1029 = vunpack.c.l.b16 %v268
    %v1030 = vunpack.c.h.b16 %v268
    %v1031 = vunpack.c.l.b16 %v269
    %v1032 = vunpack.c.h.b16 %v269
    %v1033 = vunpack.c.l.b16 %v270
    %v1034 = vunpack.c.h.b16 %v270
    %v1035 = vunpack.c.l.b16 %v271
    %v1036 = vunpack.c.h.b16 %v271
    %v1037 = vunpack.c.l.b16 %v272
    %v1038 = vunpack.c.h.b16 %v272
    %v1039 = vunpack.c.l.b16 %v273
    %v1040 = vunpack.c.h.b16 %v273
    %v1041 = vunpack.c.l.b16 %v274
    %v1042 = vunpack.c.h.b16 %v274
    %v1043 = vunpack.c.l.b16 %v275
    %v1044 = vunpack.c.h.b16 %v275
    %v1045 = vunpack.c.l.b16 %v276
    %v1046 = vunpack.c.h.b16 %v276
    %v1047 = vunpack.c.l.b16 %v277
    %v1048 = vunpack.c.h.b16 %v277
    %v1049 = vunpack.c.l.b16 %v278
    %v1050 = vunpack.c.h.b16 %v278
    %v1051 = vunpack.c.l.b16 %v279
    %v1052 = vunpack.c.h.b16 %v279
    %v1053 = vunpack.c.l.b16 %v280
    %v1054 = vunpack.c.h.b16 %v280
    %v1055 = vunpack.c.l.b16 %v281
    %v1056 = vunpack.c.h.b16 %v281
    %v1057 = vunpack.c.l.b16 %v282
    %v1058 = vunpack.c.h.b16 %v282
    %v1059 = vunpack.c.l.b16 %v283
    %v1060 = vunpack.c.h.b16 %v283
    %v1061 = vunpack.c.l.b16 %v284
    %v1062 = vunpack.c.h.b16 %v284
    %v1063 = vunpack.c.l.b16 %v285
    %v1064 = vunpack.c.h.b16 %v285
    %v1065 = vunpack.c.l.b16 %v286
    %v1066 = vunpack.c.h.b16 %v286
    %v1067 = vunpack.c.l.b16 %v287
    %v1068 = vunpack.c.h.b16 %v287
    %v1069 = vunpack.c.l.b16 %v288
    %v1070 = vunpack.c.h.b16 %v288
    %v1071 = vunpack.c.l.b16 %v289
    %v1072 = vunpack.c.h.b16 %v289
    %v1073 = vunpack.c.l.b16 %v290
    %v1074 = vunpack.c.h.b16 %v290
    %v1075 = vunpack.c.l.b16 %v291
    %v1076 = vunpack.c.h.b16 %v291
    %v1077 = vunpack.c.l.b16 %v292
    %v1078 = vunpack.c.h.b16 %v292
    %v1079 = vunpack.c.l.b16 %v293
    %v1080 = vunpack.c.h.b16 %v293
    %v1081 = vunpack.c.l.b16 %v294
    %v1082 = vunpack.c.h.b16 %v294
    %v1083 = vunpack.c.l.b16 %v295
    %v1084 = vunpack.c.h.b16 %v295
    %v1085 = vunpack.c.l.b16 %v296
    %v1086 = vunpack.c.h.b16 %v296
    %v1087 = vunpack.c.l.b16 %v297
    %v1088 = vunpack.c.h.b16 %v297
    %v1089 = vunpack.c.l.b16 %v298
    %v1090 = vunpack.c.h.b16 %v298
    %v1091 = vunpack.c.l.b16 %v299
    %v1092 = vunpack.c.h.b16 %v299
    %v1093 = vunpack.c.l.b16 %v300
    %v1094 = vunpack.c.h.b16 %v300
    %v1095 = vunpack.c.l.b16 %v301
    %v1096 = vunpack.c.h.b16 %v301
    %v1097 = vunpack.c.l.b16 %v302
    %v1098 = vunpack.c.h.b16 %v302
    %v1099 = vunpack.c.l.b16 %v303
    %v1100 = vunpack.c.h.b16 %v303
    %v1101 = vunpack.c.l.b16 %v304
    %v1102 = vunpack.c.h.b16 %v304
    %v1103 = vunpack.c.l.b16 %v305
    %v1104 = vunpack.c.h.b16 %v305
    %v1105 = vunpack.c.l.b16 %v306
    %v1106 = vunpack.c.h.b16 %v306
    %v1107 = vunpack.c.l.b16 %v307
    %v1108 = vunpack.c.h.b16 %v307
    %v1109 = vunpack.c.l.b16 %v308
    %v1110 = vunpack.c.h.b16 %v308
    %v1111 = vunpack.c.l.b16 %v309
    %v1112 = vunpack.c.h.b16 %v309
    %v1113 = vunpack.c.l.b16 %v310
    %v1114 = vunpack.c.h.b16 %v310
    %v1115 = vunpack.c.l.b16 %v311
    %v1116 = vunpack.c.h.b16 %v311
    %v1117 = vunpack.c.l.b16 %v312
    %v1118 = vunpack.c.h.b16 %v312
    %v1119 = vunpack.c.l.b16 %v313
    %v1120 = vunpack.c.h.b16 %v313
    %v1121 = vunpack.c.l.b16 %v314
    %v1122 = vunpack.c.h.b16 %v314
    %v1123 = vunpack.c.l.b16 %v315
    %v1124 = vunpack.c.h.b16 %v315
    %v1125 = vunpack.c.l.b16 %v316
    %v1126 = vunpack.c.h.b16 %v316
    %v1127 = vunpack.c.l.b16 %v317
    %v1128 = vunpack.c.h.b16 %v317
    %v1129 = vunpack.c.l.b16 %v318
    %v1130 = vunpack.c.h.b16 %v318
    %v1131 = vunpack.c.l.b16 %v319
    %v1132 = vunpack.c.h.b16 %v319
    %v1133 = vunpack.c.l.b16 %v320
    %v1134 = vunpack.c.h.b16 %v320
    %v1135 = vunpack.c.l.b16 %v321
    %v1136 = vunpack.c.h.b16 %v321
    %v1137 = vunpack.c.l.b16 %v322
    %v1138 = vunpack.c.h.b16 %v322
    %v1139 = vunpack.c.l.b16 %v323
    %v1140 = vunpack.c.h.b16 %v323
    %v1141 = vunpack.c.l.b16 %v324
    %v1142 = vunpack.c.h.b16 %v324
    %v1143 = vunpack.c.l.b16 %v325
    %v1144 = vunpack.c.h.b16 %v325
    %v1145 = vunpack.c.l.b16 %v326
    %v1146 = vunpack.c.h.b16 %v326
    %v1147 = vunpack.c.l.b16 %v327
    %v1148 = vunpack.c.h.b16 %v327
    %v1149 = vunpack.c.l.b16 %v328
    %v1150 = vunpack.c.h.b16 %v328
    %v1151 = vunpack.c.l.b16 %v329
    %v1152 = vunpack.c.h.b16 %v329
    %v1153 = vunpack.c.l.b16 %v330
    %v1154 = vunpack.c.h.b16 %v330
    %v1155 = vunpack.c.l.b16 %v331
    %v1156 = vunpack.c.h.b16 %v331
    %v1157 = vunpack.c.l.b16 %v332
    %v1158 = vunpack.c.h.b16 %v332
    %v1159 = vunpack.c.l.b16 %v333
    %v1160 = vunpack.c.h.b16 %v333
    %v1161 = vunpack.c.l.b16 %v334
    %v1162 = vunpack.c.h.b16 %v334
    %v1163 = vunpack.c.l.b16 %v335
    %v1164 = vunpack.c.h.b16 %v335
    %v1165 = vunpack.c.l.b16 %v336
    %v1166 = vunpack.c.h.b16 %v336
    %v1167 = vunpack.c.l.b16 %v337
    %v1168 = vunpack.c.h.b16 %v337
    %v1169 = vunpack.c.l.b16 %v338
    %v1170 = vunpack.c.h.b16 %v338
    %v1171 = vunpack.c.l.b16 %v339
    %v1172 = vunpack.c.h.b16 %v339
    %v1173 = vunpack.c.l.b16 %v340
    %v1174 = vunpack.c.h.b16 %v340
    %v1175 = vunpack.c.l.b16 %v341
    %v1176 = vunpack.c.h.b16 %v341
    %v1177 = vunpack.c.l.b16 %v342
    %v1178 = vunpack.c.h.b16 %v342
    %v1179 = vunpack.c.l.b16 %v343
    %v1180 = vunpack.c.h.b16 %v343
    %v1181 = vunpack.c.l.b16 %v344
    %v1182 = vunpack.c.h.b16 %v344
    %v1183 = vunpack.c.l.b16 %v345
    %v1184 = vunpack.c.h.b16 %v345
    %v1185 = vunpack.c.l.b16 %v346
    %v1186 = vunpack.c.h.b16 %v346
    %v1187 = vunpack.c.l.b16 %v347
    %v1188 = vunpack.c.h.b16 %v347
    %v1189 = vunpack.c.l.b16 %v348
    %v1190 = vunpack.c.h.b16 %v348
    %v1191 = vunpack.c.l.b16 %v349
    %v1192 = vunpack.c.h.b16 %v349
    %v1193 = vunpack.c.l.b16 %v350
    %v1194 = vunpack.c.h.b16 %v350
    %v1195 = vunpack.c.l.b16 %v351
    %v1196 = vunpack.c.h.b16 %v351
    %v1197 = vunpack.c.l.b16 %v352
    %v1198 = vunpack.c.h.b16 %v352
    %v1199 = vunpack.c.l.b16 %v353
    %v1200 = vunpack.c.h.b16 %v353
    %v1201 = vunpack.c.l.b16 %v354
    %v1202 = vunpack.c.h.b16 %v354
    %v1203 = vunpack.c.l.b16 %v355
    %v1204 = vunpack.c.h.b16 %v355
    %v1205 = vunpack.c.l.b16 %v356
    %v1206 = vunpack.c.h.b16 %v356
    %v1207 = vunpack.c.l.b16 %v357
    %v1208 = vunpack.c.h.b16 %v357
    %v1209 = vunpack.c.l.b16 %v358
    %v1210 = vunpack.c.h.b16 %v358
    %v1211 = vunpack.c.l.b16 %v359
    %v1212 = vunpack.c.h.b16 %v359
    %v1213 = vunpack.c.l.b16 %v360
    %v1214 = vunpack.c.h.b16 %v360
    %v1215 = vunpack.c.l.b16 %v361
    %v1216 = vunpack.c.h.b16 %v361
    %v1217 = vunpack.c.l.b16 %v362
    %v1218 = vunpack.c.h.b16 %v362
    %v1219 = vunpack.c.l.b16 %v363
    %v1220 = vunpack.c.h.b16 %v363
    %v1221 = vunpack.c.l.b16 %v364
    %v1222 = vunpack.c.h.b16 %v364
    %v1223 = vunpack.c.l.b16 %v365
    %v1224 = vunpack.c.h.b16 %v365
    %v1225 = vunpack.c.l.b16 %v366
    %v1226 = vunpack.c.h.b16 %v366
    %v1227 = vunpack.c.l.b16 %v367
    %v1228 = vunpack.c.h.b16 %v367
    %v1229 = vunpack.c.l.b16 %v368
    %v1230 = vunpack.c.h.b16 %v368
    %v1231 = vunpack.c.l.b16 %v369
    %v1232 = vunpack.c.h.b16 %v369
    %v1233 = vunpack.c.l.b16 %v370
    %v1234 = vunpack.c.h.b16 %v370
    %v1235 = vunpack.c.l.b16 %v371
    %v1236 = vunpack.c.h.b16 %v371
    %v1237 = vunpack.c.l.b16 %v372
    %v1238 = vunpack.c.h.b16 %v372
    %v1239 = vunpack.c.l.b16 %v373
    %v1240 = vunpack.c.h.b16 %v373
    %v1241 = vunpack.c.l.b16 %v374
    %v1242 = vunpack.c.h.b16 %v374
    %v1243 = vunpack.c.l.b16 %v375
    %v1244 = vunpack.c.h.b16 %v375
    %v1245 = vunpack.c.l.b16 %v376
    %v1246 = vunpack.c.h.b16 %v376
    %v1247 = vunpack.c.l.b16 %v377
    %v1248 = vunpack.c.h.b16 %v377
    %v1249 = vunpack.c.l.b16 %v378
    %v1250 = vunpack.c.h.b16 %v378
    %v1251 = vunpack.c.l.b16 %v379
    %v1252 = vunpack.c.h.b16 %v379
    %v1253 = vunpack.c.l.b16 %v380
    %v1254 = vunpack.c.h.b16 %v380
    %v1255 = vunpack.c.l.b16 %v381
    %v1256 = vunpack.c.h.b16 %v381
    %v1257 = vunpack.c.l.b16 %v382
    %v1258 = vunpack.c.h.b16 %v382
    %v1259 = vunpack.c.l.b16 %v383
    %v1260 = vunpack.c.h.b16 %v383
    %v1261 = vunpack.c.l.b16 %v384
    %v1262 = vunpack.c.h.b16 %v384
    %v1263 = vunpack.c.l.b16 %v385
    %v1264 = vunpack.c.h.b16 %v385
    %v1265 = vunpack.c.l.b16 %v386
    %v1266 = vunpack.c.h.b16 %v386
    %v1267 = vunpack.c.l.b16 %v387
    %v1268 = vunpack.c.h.b16 %v387
    %v1269 = vunpack.c.l.b16 %v388
    %v1270 = vunpack.c.h.b16 %v388
    %v1271 = vunpack.c.l.b16 %v389
    %v1272 = vunpack.c.h.b16 %v389
    %v1273 = vunpack.c.l.b16 %v390
    %v1274 = vunpack.c.h.b16 %v390
    %v1275 = vunpack.c.l.b16 %v391
    %v1276 = vunpack.c.h.b16 %v391
    %v1277 = vunpack.c.l.b16 %v392
    %v1278 = vunpack.c.h.b16 %v392
    %v1279 = vunpack.c.l.b16 %v393
    %v1280 = vunpack.c.h.b16 %v393
    %v1281 = vunpack.c.l.b16 %v394
    %v1282 = vunpack.c.h.b16 %v394
    %v1283 = vunpack.c.l.b16 %v395
    %v1284 = vunpack.c.h.b16 %v395
    %v1285 = vunpack.c.l.b16 %v396
    %v1286 = vunpack.c.h.b16 %v396
    %v1287 = vunpack.c.l.b16 %v397
    %v1288 = vunpack.c.h.b16 %v397
    %v1289 = vunpack.c.l.b16 %v398
    %v1290 = vunpack.c.h.b16 %v398
    %v1291 = vunpack.c.l.b16 %v399
    %v1292 = vunpack.c.h.b16 %v399
    %v1293 = vunpack.c.l.b16 %v400
    %v1294 = vunpack.c.h.b16 %v400
    %v1295 = vpack.c.b16 %v725, %v719
    %v1296 = vpack.c.b16 %v726, %v720
    %v1297 = vpack.c.b16 %v727, %v721
    %v1298 = vpack.c.b16 %v728, %v722
    %v1299 = vpack.c.b16 %v729, %v723
    %v1300 = vpack.c.b16 %v730, %v724
    %v1301 = vpack.c.b16 %v737, %v731
    %v1302 = vpack.c.b16 %v738, %v732
    %v1303 = vpack.c.b16 %v739, %v733
    %v1304 = vpack.c.b16 %v740, %v734
    %v1305 = vpack.c.b16 %v741, %v735
    %v1306 = vpack.c.b16 %v742, %v736
    %v1307 = vpack.c.b16 %v749, %v743
    %v1308 = vpack.c.b16 %v750, %v744
    %v1309 = vpack.c.b16 %v751, %v745
    %v1310 = vpack.c.b16 %v752, %v746
    %v1311 = vpack.c.b16 %v753, %v747
    %v1312 = vpack.c.b16 %v754, %v748
    %v1313 = vpack.c.b16 %v761, %v755
    %v1314 = vpack.c.b16 %v762, %v756
    %v1315 = vpack.c.b16 %v763, %v757
    %v1316 = vpack.c.b16 %v764, %v758
    %v1317 = vpack.c.b16 %v765, %v759
    %v1318 = vpack.c.b16 %v766, %v760
    %v1319 = vpack.c.b16 %v773, %v767
    %v1320 = vpack.c.b16 %v774, %v768
    %v1321 = vpack.c.b16 %v775, %v769
    %v1322 = vpack.c.b16 %v776, %v770
    %v1323 = vpack.c.b16 %v777, %v771
    %v1324 = vpack.c.b16 %v778, %v772
    %v1325 = vpack.c.b16 %v785, %v779
    %v1326 = vpack.c.b16 %v786, %v780
    %v1327 = vpack.c.b16 %v787, %v781
    %v1328 = vpack.c.b16 %v788, %v782
    %v1329 = vpack.c.b16 %v789, %v783
    %v1330 = vpack.c.b16 %v790, %v784
    %v1331 = vpack.c.b16 %v797, %v791
    %v1332 = vpack.c.b16 %v798, %v792
    %v1333 = vpack.c.b16 %v799, %v793
    %v1334 = vpack.c.b16 %v800, %v794
    %v1335 = vpack.c.b16 %v801, %v795
    %v1336 = vpack.c.b16 %v802, %v796
    %v1337 = vpack.c.b16 %v809, %v803
    %v1338 = vpack.c.b16 %v810, %v804
    %v1339 = vpack.c.b16 %v811, %v805
    %v1340 = vpack.c.b16 %v812, %v806
    %v1341 = vpack.c.b16 %v813, %v807
    %v1342 = vpack.c.b16 %v814, %v808
    %v1343 = vpack.c.b16 %v821, %v815
    %v1344 = vpack.c.b16 %v822, %v816
    %v1345 = vpack.c.b16 %v823, %v817
    %v1346 = vpack.c.b16 %v824, %v818
    %v1347 = vpack.c.b16 %v825, %v819
    %v1348 = vpack.c.b16 %v826, %v820
    %v1349 = vpack.c.b16 %v833, %v827
    %v1350 = vpack.c.b16 %v834, %v828
    %v1351 = vpack.c.b16 %v835, %v829
    %v1352 = vpack.c.b16 %v836, %v830
    %v1353 = vpack.c.b16 %v837, %v831
    %v1354 = vpack.c.b16 %v838, %v832
    %v1355 = vpack.c.b16 %v845, %v839
    %v1356 = vpack.c.b16 %v846, %v840
    %v1357 = vpack.c.b16 %v847, %v841
    %v1358 = vpack.c.b16 %v848, %v842
    %v1359 = vpack.c.b16 %v849, %v843
    %v1360 = vpack.c.b16 %v850, %v844
    %v1361 = vpack.c.b16 %v857, %v851
    %v1362 = vpack.c.b16 %v858, %v852
    %v1363 = vpack.c.b16 %v859, %v853
    %v1364 = vpack.c.b16 %v860, %v854
    %v1365 = vpack.c.b16 %v861, %v855
    %v1366 = vpack.c.b16 %v862, %v856
    %v1367 = vpack.c.b16 %v869, %v863
    %v1368 = vpack.c.b16 %v870, %v864
    %v1369 = vpack.c.b16 %v871, %v865
    %v1370 = vpack.c.b16 %v872, %v866
    %v1371 = vpack.c.b16 %v873, %v867
    %v1372 = vpack.c.b16 %v874, %v868
    %v1373 = vpack.c.b16 %v881, %v875
    %v1374 = vpack.c.b16 %v882, %v876
    %v1375 = vpack.c.b16 %v883, %v877
    %v1376 = vpack.c.b16 %v884, %v878
    %v1377 = vpack.c.b16 %v885, %v879
    %v1378 = vpack.c.b16 %v886, %v880
    %v1379 = vpack.c.b16 %v893, %v887
    %v1380 = vpack.c.b16 %v894, %v888
    %v1381 = vpack.c.b16 %v895, %v889
    %v1382 = vpack.c.b16 %v896, %v890
    %v1383 = vpack.c.b16 %v897, %v891
    %v1384 = vpack.c.b16 %v898, %v892
    %v1385 = vpack.c.b16 %v905, %v899
    %v1386 = vpack.c.b16 %v906, %v900
    %v1387 = vpack.c.b16 %v907, %v901
    %v1388 = vpack.c.b16 %v908, %v902
    %v1389 = vpack.c.b16 %v909, %v903
    %v1390 = vpack.c.b16 %v910, %v904
    %v1391 = vpack.c.b16 %v917, %v911
    %v1392 = vpack.c.b16 %v918, %v912
    %v1393 = vpack.c.b16 %v919, %v913
    %v1394 = vpack.c.b16 %v920, %v914
    %v1395 = vpack.c.b16 %v921, %v915
    %v1396 = vpack.c.b16 %v922, %v916
    %v1397 = vpack.c.b16 %v929, %v923
    %v1398 = vpack.c.b16 %v930, %v924
    %v1399 = vpack.c.b16 %v931, %v925
    %v1400 = vpack.c.b16 %v932, %v926
    %v1401 = vpack.c.b16 %v933, %v927
    %v1402 = vpack.c.b16 %v934, %v928
    %v1403 = vpack.c.b16 %v941, %v935
    %v1404 = vpack.c.b16 %v942, %v936
    %v1405 = vpack.c.b16 %v943, %v937
    %v1406 = vpack.c.b16 %v944, %v938
    %v1407 = vpack.c.b16 %v945, %v939
    %v1408 = vpack.c.b16 %v946, %v940
    %v1409 = vpack.c.b16 %v953, %v947
    %v1410 = vpack.c.b16 %v954, %v948
    %v1411 = vpack.c.b16 %v955, %v949
    %v1412 = vpack.c.b16 %v956, %v950
    %v1413 = vpack.c.b16 %v957, %v951
    %v1414 = vpack.c.b16 %v958, %v952
    %v1415 = vpack.c.b16 %v965, %v959
    %v1416 = vpack.c.b16 %v966, %v960
    %v1417 = vpack.c.b16 %v967, %v961
    %v1418 = vpack.c.b16 %v968, %v962
    %v1419 = vpack.c.b16 %v969, %v963
    %v1420 = vpack.c.b16 %v970, %v964
    %v1421 = vpack.c.b16 %v977, %v971
    %v1422 = vpack.c.b16 %v978, %v972
    %v1423 = vpack.c.b16 %v979, %v973
    %v1424 = vpack.c.b16 %v980, %v974
    %v1425 = vpack.c.b16 %v981, %v975
    %v1426 = vpack.c.b16 %v982, %v976
    %v1427 = vpack.c.b16 %v989, %v983
    %v1428 = vpack.c.b16 %v990, %v984
    %v1429 = vpack.c.b16 %v991, %v985
    %v1430 = vpack.c.b16 %v992, %v986
    %v1431 = vpack.c.b16 %v993, %v987
    %v1432 = vpack.c.b16 %v994, %v988
    %v1433 = vpack.c.b16 %v1001, %v995
    %v1434 = vpack.c.b16 %v1002, %v996
    %v1435 = vpack.c.b16 %v1003, %v997
    %v1436 = vpack.c.b16 %v1004, %v998
    %v1437 = vpack.c.b16 %v1005, %v999
    %v1438 = vpack.c.b16 %v1006, %v1000
    %v1439 = vpack.c.b16 %v1013, %v1007
    %v1440 = vpack.c.b16 %v1014, %v1008
    %v1441 = vpack.c.b16 %v1015, %v1009
    %v1442 = vpack.c.b16 %v1016, %v1010
    %v1443 = vpack.c.b16 %v1017, %v1011
    %v1444 = vpack.c.b16 %v1018, %v1012
    %v1445 = vpack.c.b16 %v1025, %v1019
    %v1446 = vpack.c.b16 %v1026, %v1020
    %v1447 = vpack.c.b16 %v1027, %v1021
    %v1448 = vpack.c.b16 %v1028, %v1022
    %v1449 = vpack.c.b16 %v1029, %v1023
    %v1450 = vpack.c.b16 %v1030, %v1024
    %v1451 = vpack.c.b16 %v1037, %v1031
    %v1452 = vpack.c.b16 %v1038, %v1032
    %v1453 = vpack.c.b16 %v1039, %v1033
    %v1454 = vpack.c.b16 %v1040, %v1034
    %v1455 = vpack.c.b16 %v1041, %v1035
    %v1456 = vpack.c.b16 %v1042, %v1036
    %v1457 = vpack.c.b16 %v1049, %v1043
    %v1458 = vpack.c.b16 %v1050, %v1044
    %v1459 = vpack.c.b16 %v1051, %v1045
    %v1460 = vpack.c.b16 %v1052, %v1046
    %v1461 = vpack.c.b16 %v1053, %v1047
    %v1462 = vpack.c.b16 %v1054, %v1048
    %v1463 = vpack.c.b16 %v1061, %v1055
    %v1464 = vpack.c.b16 %v1062, %v1056
    %v1465 = vpack.c.b16 %v1063, %v1057
    %v1466 = vpack.c.b16 %v1064, %v1058
    %v1467 = vpack.c.b16 %v1065, %v1059
    %v1468 = vpack.c.b16 %v1066, %v1060
    %v1469 = vpack.c.b16 %v1073, %v1067
    %v1470 = vpack.c.b16 %v1074, %v1068
    %v1471 = vpack.c.b16 %v1075, %v1069
    %v1472 = vpack.c.b16 %v1076, %v1070
    %v1473 = vpack.c.b16 %v1077, %v1071
    %v1474 = vpack.c.b16 %v1078, %v1072
    %v1475 = vpack.c.b16 %v1085, %v1079
    %v1476 = vpack.c.b16 %v1086, %v1080
    %v1477 = vpack.c.b16 %v1087, %v1081
    %v1478 = vpack.c.b16 %v1088, %v1082
    %v1479 = vpack.c.b16 %v1089, %v1083
    %v1480 = vpack.c.b16 %v1090, %v1084
    %v1481 = vpack.c.b16 %v1097, %v1091
    %v1482 = vpack.c.b16 %v1098, %v1092
    %v1483 = vpack.c.b16 %v1099, %v1093
    %v1484 = vpack.c.b16 %v1100, %v1094
    %v1485 = vpack.c.b16 %v1101, %v1095
    %v1486 = vpack.c.b16 %v1102, %v1096
    %v1487 = vpack.c.b16 %v1109, %v1103
    %v1488 = vpack.c.b16 %v1110, %v1104
    %v1489 = vpack.c.b16 %v1111, %v1105
    %v1490 = vpack.c.b16 %v1112, %v1106
    %v1491 = vpack.c.b16 %v1113, %v1107
    %v1492 = vpack.c.b16 %v1114, %v1108
    %v1493 = vpack.c.b16 %v1121, %v1115
    %v1494 = vpack.c.b16 %v1122, %v1116
    %v1495 = vpack.c.b16 %v1123, %v1117
    %v1496 = vpack.c.b16 %v1124, %v1118
    %v1497 = vpack.c.b16 %v1125, %v1119
    %v1498 = vpack.c.b16 %v1126, %v1120
    %v1499 = vpack.c.b16 %v1133, %v1127
    %v1500 = vpack.c.b16 %v1134, %v1128
    %v1501 = vpack.c.b16 %v1135, %v1129
    %v1502 = vpack.c.b16 %v1136, %v1130
    %v1503 = vpack.c.b16 %v1137, %v1131
    %v1504 = vpack.c.b16 %v1138, %v1132
    %v1505 = vpack.c.b16 %v1145, %v1139
    %v1506 = vpack.c.b16 %v1146, %v1140
    %v1507 = vpack.c.b16 %v1147, %v1141
    %v1508 = vpack.c.b16 %v1148, %v1142
    %v1509 = vpack.c.b16 %v1149, %v1143
    %v1510 = vpack.c.b16 %v1150, %v1144
    %v1511 = vpack.c.b16 %v1157, %v1151
    %v1512 = vpack.c.b16 %v1158, %v1152
    %v1513 = vpack.c.b16 %v1159, %v1153
    %v1514 = vpack.c.b16 %v1160, %v1154
    %v1515 = vpack.c.b16 %v1161, %v1155
    %v1516 = vpack.c.b16 %v1162, %v1156
    %v1517 = vpack.c.b16 %v1169, %v1163
    %v1518 = vpack.c.b16 %v1170, %v1164
    %v1519 = vpack.c.b16 %v1171, %v1165
    %v1520 = vpack.c.b16 %v1172, %v1166
    %v1521 = vpack.c.b16 %v1173, %v1167
    %v1522 = vpack.c.b16 %v1174, %v1168
    %v1523 = vpack.c.b16 %v1181, %v1175
    %v1524 = vpack.c.b16 %v1182, %v1176
    %v1525 = vpack.c.b16 %v1183, %v1177
    %v1526 = vpack.c.b16 %v1184, %v1178
    %v1527 = vpack.c.b16 %v1185, %v1179
    %v1528 = vpack.c.b16 %v1186, %v1180
    %v1529 = vpack.c.b16 %v1193, %v1187
    %v1530 = vpack.c.b16 %v1194, %v1188
    %v1531 = vpack.c.b16 %v1195, %v1189
    %v1532 = vpack.c.b16 %v1196, %v1190
    %v1533 = vpack.c.b16 %v1197, %v1191
    %v1534 = vpack.c.b16 %v1198, %v1192
    %v1535 = vpack.c.b16 %v1205, %v1199
    %v1536 = vpack.c.b16 %v1206, %v1200
    %v1537 = vpack.c.b16 %v1207, %v1201
    %v1538 = vpack.c.b16 %v1208, %v1202
    %v1539 = vpack.c.b16 %v1209, %v1203
    %v1540 = vpack.c.b16 %v1210, %v1204
    %v1541 = vpack.c.b16 %v1217, %v1211
    %v1542 = vpack.c.b16 %v1218, %v1212
    %v1543 = vpack.c.b16 %v1219, %v1213
    %v1544 = vpack.c.b16 %v1220, %v1214
    %v1545 = vpack.c.b16 %v1221, %v1215
    %v1546 = vpack.c.b16 %v1222, %v1216
    %v1547 = vpack.c.b16 %v1229, %v1223
    %v1548 = vpack.c.b16 %v1230, %v1224
    %v1549 = vpack.c.b16 %v1231, %v1225
    %v1550 = vpack.c.b16 %v1232, %v1226
    %v1551 = vpack.c.b16 %v1233, %v1227
    %v1552 = vpack.c.b16 %v1234, %v1228
    %v1553 = vpack.c.b16 %v1241, %v1235
    %v1554 = vpack.c.b16 %v1242, %v1236
    %v1555 = vpack.c.b16 %v1243, %v1237
    %v1556 = vpack.c.b16 %v1244, %v1238
    %v1557 = vpack.c.b16 %v1245, %v1239
    %v1558 = vpack.c.b16 %v1246, %v1240
    %v1559 = vpack.c.b16 %v1253, %v1247
    %v1560 = vpack.c.b16 %v1254, %v1248
    %v1561 = vpack.c.b16 %v1255, %v1249
    %v1562 = vpack.c.b16 %v1256, %v1250
    %v1563 = vpack.c.b16 %v1257, %v1251
    %v1564 = vpack.c.b16 %v1258, %v1252
    %v1565 = vpack.c.b16 %v1265, %v1259
    %v1566 = vpack.c.b16 %v1266, %v1260
    %v1567 = vpack.c.b16 %v1267, %v1261
    %v1568 = vpack.c.b16 %v1268, %v1262
    %v1569 = vpack.c.b16 %v1269, %v1263
    %v1570 = vpack.c.b16 %v1270, %v1264
    %v1571 = vpack.c.b16 %v1277, %v1271
    %v1572 = vpack.c.b16 %v1278, %v1272
    %v1573 = vpack.c.b16 %v1279, %v1273
    %v1574 = vpack.c.b16 %v1280, %v1274
    %v1575 = vpack.c.b16 %v1281, %v1275
    %v1576 = vpack.c.b16 %v1282, %v1276
    %v1577 = vpack.c.b16 %v1289, %v1283
    %v1578 = vpack.c.b16 %v1290, %v1284
    %v1579 = vpack.c.b16 %v1291, %v1285
    %v1580 = vpack.c.b16 %v1292, %v1286
    %v1581 = vpack.c.b16 %v1293, %v1287
    %v1582 = vpack.c.b16 %v1294, %v1288
    %1871 = vmatpush.bf16.msra.mxu0 %v1337
    %1872 = vmatpush.bf16.msra.mxu0 %v1331
    %1873 = vmatpush.bf16.msra.mxu0 %v1325
    %1874 = vmatpush.bf16.msra.mxu0 %v1319
    %1875 = vmatpush.bf16.msra.mxu0 %v1313
    %1876 = vmatpush.bf16.msra.mxu0 %v1307
    %1877 = vmatpush.bf16.msra.mxu0 %v1301
    %1878 = vmatpush.bf16.msra.mxu0 %v1295
    %1879 = vmatmul.bf16.gmra.mxu0 %v419
    %v1880 = vpop.f32.mrf.mxu0
    %v1881 = vadd.f32 0.0, %v1880
    %v1882 = vpop.f32.mrf.mxu0
    %v1883 = vadd.f32 0.0, %v1882
    %1884 = vdwg.mxu0
    %1885 = vmatpush.bf16.msra.mxu0 %v1385
    %1886 = vmatpush.bf16.msra.mxu0 %v1379
    %1887 = vmatpush.bf16.msra.mxu0 %v1373
    %1888 = vmatpush.bf16.msra.mxu0 %v1367
    %1889 = vmatpush.bf16.msra.mxu0 %v1361
    %1890 = vmatpush.bf16.msra.mxu0 %v1355
    %1891 = vmatpush.bf16.msra.mxu0 %v1349
    %1892 = vmatpush.bf16.msra.mxu0 %v1343
    %1893 = vmatmul.bf16.gmra.mxu0 %v420
    %v1894 = vpop.f32.mrf.mxu0
    %v1895 = vadd.f32 %v1881, %v1894
    %v1896 = vpop.f32.mrf.mxu0
    %v1897 = vadd.f32 %v1883, %v1896
    %1898 = vdwg.mxu0
    %1899 = vmatpush.bf16.msra.mxu0 %v1433
    %1900 = vmatpush.bf16.msra.mxu0 %v1427
    %1901 = vmatpush.bf16.msra.mxu0 %v1421
    %1902 = vmatpush.bf16.msra.mxu0 %v1415
    %1903 = vmatpush.bf16.msra.mxu0 %v1409
    %1904 = vmatpush.bf16.msra.mxu0 %v1403
    %1905 = vmatpush.bf16.msra.mxu0 %v1397
    %1906 = vmatpush.bf16.msra.mxu0 %v1391
    %1907 = vmatmul.bf16.gmra.mxu0 %v421
    %v1908 = vpop.f32.mrf.mxu0
    %v1909 = vadd.f32 %v1895, %v1908
    %v1910 = vpop.f32.mrf.mxu0
    %v1911 = vadd.f32 %v1897, %v1910
    %1912 = vdwg.mxu0
    %1913 = vmatpush.bf16.msra.mxu0 %v1481
    %1914 = vmatpush.bf16.msra.mxu0 %v1475
    %1915 = vmatpush.bf16.msra.mxu0 %v1469
    %1916 = vmatpush.bf16.msra.mxu0 %v1463
    %1917 = vmatpush.bf16.msra.mxu0 %v1457
    %1918 = vmatpush.bf16.msra.mxu0 %v1451
    %1919 = vmatpush.bf16.msra.mxu0 %v1445
    %1920 = vmatpush.bf16.msra.mxu0 %v1439
    %1921 = vmatmul.bf16.gmra.mxu0 %v422
    %v1922 = vpop.f32.mrf.mxu0
    %v1923 = vadd.f32 %v1909, %v1922
    %v1924 = vpop.f32.mrf.mxu0
    %v1925 = vadd.f32 %v1911, %v1924
    %1926 = vdwg.mxu0
    %1927 = vmatpush.bf16.msra.mxu0 %v1529
    %1928 = vmatpush.bf16.msra.mxu0 %v1523
    %1929 = vmatpush.bf16.msra.mxu0 %v1517
    %1930 = vmatpush.bf16.msra.mxu0 %v1511
    %1931 = vmatpush.bf16.msra.mxu0 %v1505
    %1932 = vmatpush.bf16.msra.mxu0 %v1499
    %1933 = vmatpush.bf16.msra.mxu0 %v1493
    %1934 = vmatpush.bf16.msra.mxu0 %v1487
    %1935 = vmatmul.bf16.gmra.mxu0 %v423
    %v1936 = vpop.f32.mrf.mxu0
    %v1937 = vadd.f32 %v1923, %v1936
    %v1938 = vpop.f32.mrf.mxu0
    %v1939 = vadd.f32 %v1925, %v1938
    %1940 = vdwg.mxu0
    %1941 = vmatpush.bf16.msra.mxu0 %v1577
    %1942 = vmatpush.bf16.msra.mxu0 %v1571
    %1943 = vmatpush.bf16.msra.mxu0 %v1565
    %1944 = vmatpush.bf16.msra.mxu0 %v1559
    %1945 = vmatpush.bf16.msra.mxu0 %v1553
    %1946 = vmatpush.bf16.msra.mxu0 %v1547
    %1947 = vmatpush.bf16.msra.mxu0 %v1541
    %1948 = vmatpush.bf16.msra.mxu0 %v1535
    %1949 = vmatmul.bf16.gmra.mxu0 %v424
    %v1950 = vpop.f32.mrf.mxu0
    %v1951 = vadd.f32 %v1937, %v1950
    %v1952 = vpop.f32.mrf.mxu0
    %v1953 = vadd.f32 %v1939, %v1952
    %1954 = vdwg.mxu0
    %1955 = vmatpush.bf16.msra.mxu0 %v1338
    %1956 = vmatpush.bf16.msra.mxu0 %v1332
    %1957 = vmatpush.bf16.msra.mxu0 %v1326
    %1958 = vmatpush.bf16.msra.mxu0 %v1320
    %1959 = vmatpush.bf16.msra.mxu0 %v1314
    %1960 = vmatpush.bf16.msra.mxu0 %v1308
    %1961 = vmatpush.bf16.msra.mxu0 %v1302
    %1962 = vmatpush.bf16.msra.mxu0 %v1296
    %1963 = vmatmul.bf16.gmra.mxu0 %v419
    %v1964 = vpop.f32.mrf.mxu0
    %v1965 = vadd.f32 0.0, %v1964
    %v1966 = vpop.f32.mrf.mxu0
    %v1967 = vadd.f32 0.0, %v1966
    %1968 = vdwg.mxu0
    %1969 = vmatpush.bf16.msra.mxu0 %v1386
    %1970 = vmatpush.bf16.msra.mxu0 %v1380
    %1971 = vmatpush.bf16.msra.mxu0 %v1374
    %1972 = vmatpush.bf16.msra.mxu0 %v1368
    %1973 = vmatpush.bf16.msra.mxu0 %v1362
    %1974 = vmatpush.bf16.msra.mxu0 %v1356
    %1975 = vmatpush.bf16.msra.mxu0 %v1350
    %1976 = vmatpush.bf16.msra.mxu0 %v1344
    %1977 = vmatmul.bf16.gmra.mxu0 %v420
    %v1978 = vpop.f32.mrf.mxu0
    %v1979 = vadd.f32 %v1965, %v1978
    %v1980 = vpop.f32.mrf.mxu0
    %v1981 = vadd.f32 %v1967, %v1980
    %1982 = vdwg.mxu0
    %1983 = vmatpush.bf16.msra.mxu0 %v1434
    %1984 = vmatpush.bf16.msra.mxu0 %v1428
    %1985 = vmatpush.bf16.msra.mxu0 %v1422
    %1986 = vmatpush.bf16.msra.mxu0 %v1416
    %1987 = vmatpush.bf16.msra.mxu0 %v1410
    %1988 = vmatpush.bf16.msra.mxu0 %v1404
    %1989 = vmatpush.bf16.msra.mxu0 %v1398
    %1990 = vmatpush.bf16.msra.mxu0 %v1392
    %1991 = vmatmul.bf16.gmra.mxu0 %v421
    %v1992 = vpop.f32.mrf.mxu0
    %v1993 = vadd.f32 %v1979, %v1992
    %v1994 = vpop.f32.mrf.mxu0
    %v1995 = vadd.f32 %v1981, %v1994
    %1996 = vdwg.mxu0
    %1997 = vmatpush.bf16.msra.mxu0 %v1482
    %1998 = vmatpush.bf16.msra.mxu0 %v1476
    %1999 = vmatpush.bf16.msra.mxu0 %v1470
    %2000 = vmatpush.bf16.msra.mxu0 %v1464
    %2001 = vmatpush.bf16.msra.mxu0 %v1458
    %2002 = vmatpush.bf16.msra.mxu0 %v1452
    %2003 = vmatpush.bf16.msra.mxu0 %v1446
    %2004 = vmatpush.bf16.msra.mxu0 %v1440
    %2005 = vmatmul.bf16.gmra.mxu0 %v422
    %v2006 = vpop.f32.mrf.mxu0
    %v2007 = vadd.f32 %v1993, %v2006
    %v2008 = vpop.f32.mrf.mxu0
    %v2009 = vadd.f32 %v1995, %v2008
    %2010 = vdwg.mxu0
    %2011 = vmatpush.bf16.msra.mxu0 %v1530
    %2012 = vmatpush.bf16.msra.mxu0 %v1524
    %2013 = vmatpush.bf16.msra.mxu0 %v1518
    %2014 = vmatpush.bf16.msra.mxu0 %v1512
    %2015 = vmatpush.bf16.msra.mxu0 %v1506
    %2016 = vmatpush.bf16.msra.mxu0 %v1500
    %2017 = vmatpush.bf16.msra.mxu0 %v1494
    %2018 = vmatpush.bf16.msra.mxu0 %v1488
    %2019 = vmatmul.bf16.gmra.mxu0 %v423
    %v2020 = vpop.f32.mrf.mxu0
    %v2021 = vadd.f32 %v2007, %v2020
    %v2022 = vpop.f32.mrf.mxu0
    %v2023 = vadd.f32 %v2009, %v2022
    %2024 = vdwg.mxu0
    %2025 = vmatpush.bf16.msra.mxu0 %v1578
    %2026 = vmatpush.bf16.msra.mxu0 %v1572
    %2027 = vmatpush.bf16.msra.mxu0 %v1566
    %2028 = vmatpush.bf16.msra.mxu0 %v1560
    %2029 = vmatpush.bf16.msra.mxu0 %v1554
    %2030 = vmatpush.bf16.msra.mxu0 %v1548
    %2031 = vmatpush.bf16.msra.mxu0 %v1542
    %2032 = vmatpush.bf16.msra.mxu0 %v1536
    %2033 = vmatmul.bf16.gmra.mxu0 %v424
    %v2034 = vpop.f32.mrf.mxu0
    %v2035 = vadd.f32 %v2021, %v2034
    %v2036 = vpop.f32.mrf.mxu0
    %v2037 = vadd.f32 %v2023, %v2036
    %2038 = vdwg.mxu0
    %2039 = vmatpush.bf16.msra.mxu0 %v1339
    %2040 = vmatpush.bf16.msra.mxu0 %v1333
    %2041 = vmatpush.bf16.msra.mxu0 %v1327
    %2042 = vmatpush.bf16.msra.mxu0 %v1321
    %2043 = vmatpush.bf16.msra.mxu0 %v1315
    %2044 = vmatpush.bf16.msra.mxu0 %v1309
    %2045 = vmatpush.bf16.msra.mxu0 %v1303
    %2046 = vmatpush.bf16.msra.mxu0 %v1297
    %2047 = vmatmul.bf16.gmra.mxu0 %v419
    %v2048 = vpop.f32.mrf.mxu0
    %v2049 = vadd.f32 0.0, %v2048
    %v2050 = vpop.f32.mrf.mxu0
    %v2051 = vadd.f32 0.0, %v2050
    %2052 = vdwg.mxu0
    %2053 = vmatpush.bf16.msra.mxu0 %v1387
    %2054 = vmatpush.bf16.msra.mxu0 %v1381
    %2055 = vmatpush.bf16.msra.mxu0 %v1375
    %2056 = vmatpush.bf16.msra.mxu0 %v1369
    %2057 = vmatpush.bf16.msra.mxu0 %v1363
    %2058 = vmatpush.bf16.msra.mxu0 %v1357
    %2059 = vmatpush.bf16.msra.mxu0 %v1351
    %2060 = vmatpush.bf16.msra.mxu0 %v1345
    %2061 = vmatmul.bf16.gmra.mxu0 %v420
    %v2062 = vpop.f32.mrf.mxu0
    %v2063 = vadd.f32 %v2049, %v2062
    %v2064 = vpop.f32.mrf.mxu0
    %v2065 = vadd.f32 %v2051, %v2064
    %2066 = vdwg.mxu0
    %2067 = vmatpush.bf16.msra.mxu0 %v1435
    %2068 = vmatpush.bf16.msra.mxu0 %v1429
    %2069 = vmatpush.bf16.msra.mxu0 %v1423
    %2070 = vmatpush.bf16.msra.mxu0 %v1417
    %2071 = vmatpush.bf16.msra.mxu0 %v1411
    %2072 = vmatpush.bf16.msra.mxu0 %v1405
    %2073 = vmatpush.bf16.msra.mxu0 %v1399
    %2074 = vmatpush.bf16.msra.mxu0 %v1393
    %2075 = vmatmul.bf16.gmra.mxu0 %v421
    %v2076 = vpop.f32.mrf.mxu0
    %v2077 = vadd.f32 %v2063, %v2076
    %v2078 = vpop.f32.mrf.mxu0
    %v2079 = vadd.f32 %v2065, %v2078
    %2080 = vdwg.mxu0
    %2081 = vmatpush.bf16.msra.mxu0 %v1483
    %2082 = vmatpush.bf16.msra.mxu0 %v1477
    %2083 = vmatpush.bf16.msra.mxu0 %v1471
    %2084 = vmatpush.bf16.msra.mxu0 %v1465
    %2085 = vmatpush.bf16.msra.mxu0 %v1459
    %2086 = vmatpush.bf16.msra.mxu0 %v1453
    %2087 = vmatpush.bf16.msra.mxu0 %v1447
    %2088 = vmatpush.bf16.msra.mxu0 %v1441
    %2089 = vmatmul.bf16.gmra.mxu0 %v422
    %v2090 = vpop.f32.mrf.mxu0
    %v2091 = vadd.f32 %v2077, %v2090
    %v2092 = vpop.f32.mrf.mxu0
    %v2093 = vadd.f32 %v2079, %v2092
    %2094 = vdwg.mxu0
    %2095 = vmatpush.bf16.msra.mxu0 %v1531
    %2096 = vmatpush.bf16.msra.mxu0 %v1525
    %2097 = vmatpush.bf16.msra.mxu0 %v1519
    %2098 = vmatpush.bf16.msra.mxu0 %v1513
    %2099 = vmatpush.bf16.msra.mxu0 %v1507
    %2100 = vmatpush.bf16.msra.mxu0 %v1501
    %2101 = vmatpush.bf16.msra.mxu0 %v1495
    %2102 = vmatpush.bf16.msra.mxu0 %v1489
    %2103 = vmatmul.bf16.gmra.mxu0 %v423
    %v2104 = vpop.f32.mrf.mxu0
    %v2105 = vadd.f32 %v2091, %v2104
    %v2106 = vpop.f32.mrf.mxu0
    %v2107 = vadd.f32 %v2093, %v2106
    %2108 = vdwg.mxu0
    %2109 = vmatpush.bf16.msra.mxu0 %v1579
    %2110 = vmatpush.bf16.msra.mxu0 %v1573
    %2111 = vmatpush.bf16.msra.mxu0 %v1567
    %2112 = vmatpush.bf16.msra.mxu0 %v1561
    %2113 = vmatpush.bf16.msra.mxu0 %v1555
    %2114 = vmatpush.bf16.msra.mxu0 %v1549
    %2115 = vmatpush.bf16.msra.mxu0 %v1543
    %2116 = vmatpush.bf16.msra.mxu0 %v1537
    %2117 = vmatmul.bf16.gmra.mxu0 %v424
    %v2118 = vpop.f32.mrf.mxu0
    %v2119 = vadd.f32 %v2105, %v2118
    %v2120 = vpop.f32.mrf.mxu0
    %v2121 = vadd.f32 %v2107, %v2120
    %2122 = vdwg.mxu0
    %2123 = vmatpush.bf16.msra.mxu0 %v1340
    %2124 = vmatpush.bf16.msra.mxu0 %v1334
    %2125 = vmatpush.bf16.msra.mxu0 %v1328
    %2126 = vmatpush.bf16.msra.mxu0 %v1322
    %2127 = vmatpush.bf16.msra.mxu0 %v1316
    %2128 = vmatpush.bf16.msra.mxu0 %v1310
    %2129 = vmatpush.bf16.msra.mxu0 %v1304
    %2130 = vmatpush.bf16.msra.mxu0 %v1298
    %2131 = vmatmul.bf16.gmra.mxu0 %v419
    %v2132 = vpop.f32.mrf.mxu0
    %v2133 = vadd.f32 0.0, %v2132
    %v2134 = vpop.f32.mrf.mxu0
    %v2135 = vadd.f32 0.0, %v2134
    %2136 = vdwg.mxu0
    %2137 = vmatpush.bf16.msra.mxu0 %v1388
    %2138 = vmatpush.bf16.msra.mxu0 %v1382
    %2139 = vmatpush.bf16.msra.mxu0 %v1376
    %2140 = vmatpush.bf16.msra.mxu0 %v1370
    %2141 = vmatpush.bf16.msra.mxu0 %v1364
    %2142 = vmatpush.bf16.msra.mxu0 %v1358
    %2143 = vmatpush.bf16.msra.mxu0 %v1352
    %2144 = vmatpush.bf16.msra.mxu0 %v1346
    %2145 = vmatmul.bf16.gmra.mxu0 %v420
    %v2146 = vpop.f32.mrf.mxu0
    %v2147 = vadd.f32 %v2133, %v2146
    %v2148 = vpop.f32.mrf.mxu0
    %v2149 = vadd.f32 %v2135, %v2148
    %2150 = vdwg.mxu0
    %2151 = vmatpush.bf16.msra.mxu0 %v1436
    %2152 = vmatpush.bf16.msra.mxu0 %v1430
    %2153 = vmatpush.bf16.msra.mxu0 %v1424
    %2154 = vmatpush.bf16.msra.mxu0 %v1418
    %2155 = vmatpush.bf16.msra.mxu0 %v1412
    %2156 = vmatpush.bf16.msra.mxu0 %v1406
    %2157 = vmatpush.bf16.msra.mxu0 %v1400
    %2158 = vmatpush.bf16.msra.mxu0 %v1394
    %2159 = vmatmul.bf16.gmra.mxu0 %v421
    %v2160 = vpop.f32.mrf.mxu0
    %v2161 = vadd.f32 %v2147, %v2160
    %v2162 = vpop.f32.mrf.mxu0
    %v2163 = vadd.f32 %v2149, %v2162
    %2164 = vdwg.mxu0
    %2165 = vmatpush.bf16.msra.mxu0 %v1484
    %2166 = vmatpush.bf16.msra.mxu0 %v1478
    %2167 = vmatpush.bf16.msra.mxu0 %v1472
    %2168 = vmatpush.bf16.msra.mxu0 %v1466
    %2169 = vmatpush.bf16.msra.mxu0 %v1460
    %2170 = vmatpush.bf16.msra.mxu0 %v1454
    %2171 = vmatpush.bf16.msra.mxu0 %v1448
    %2172 = vmatpush.bf16.msra.mxu0 %v1442
    %2173 = vmatmul.bf16.gmra.mxu0 %v422
    %v2174 = vpop.f32.mrf.mxu0
    %v2175 = vadd.f32 %v2161, %v2174
    %v2176 = vpop.f32.mrf.mxu0
    %v2177 = vadd.f32 %v2163, %v2176
    %2178 = vdwg.mxu0
    %2179 = vmatpush.bf16.msra.mxu0 %v1532
    %2180 = vmatpush.bf16.msra.mxu0 %v1526
    %2181 = vmatpush.bf16.msra.mxu0 %v1520
    %2182 = vmatpush.bf16.msra.mxu0 %v1514
    %2183 = vmatpush.bf16.msra.mxu0 %v1508
    %2184 = vmatpush.bf16.msra.mxu0 %v1502
    %2185 = vmatpush.bf16.msra.mxu0 %v1496
    %2186 = vmatpush.bf16.msra.mxu0 %v1490
    %2187 = vmatmul.bf16.gmra.mxu0 %v423
    %v2188 = vpop.f32.mrf.mxu0
    %v2189 = vadd.f32 %v2175, %v2188
    %v2190 = vpop.f32.mrf.mxu0
    %v2191 = vadd.f32 %v2177, %v2190
    %2192 = vdwg.mxu0
    %2193 = vmatpush.bf16.msra.mxu0 %v1580
    %2194 = vmatpush.bf16.msra.mxu0 %v1574
    %2195 = vmatpush.bf16.msra.mxu0 %v1568
    %2196 = vmatpush.bf16.msra.mxu0 %v1562
    %2197 = vmatpush.bf16.msra.mxu0 %v1556
    %2198 = vmatpush.bf16.msra.mxu0 %v1550
    %2199 = vmatpush.bf16.msra.mxu0 %v1544
    %2200 = vmatpush.bf16.msra.mxu0 %v1538
    %2201 = vmatmul.bf16.gmra.mxu0 %v424
    %v2202 = vpop.f32.mrf.mxu0
    %v2203 = vadd.f32 %v2189, %v2202
    %v2204 = vpop.f32.mrf.mxu0
    %v2205 = vadd.f32 %v2191, %v2204
    %2206 = vdwg.mxu0
    %2207 = vmatpush.bf16.msra.mxu0 %v1341
    %2208 = vmatpush.bf16.msra.mxu0 %v1335
    %2209 = vmatpush.bf16.msra.mxu0 %v1329
    %2210 = vmatpush.bf16.msra.mxu0 %v1323
    %2211 = vmatpush.bf16.msra.mxu0 %v1317
    %2212 = vmatpush.bf16.msra.mxu0 %v1311
    %2213 = vmatpush.bf16.msra.mxu0 %v1305
    %2214 = vmatpush.bf16.msra.mxu0 %v1299
    %2215 = vmatmul.bf16.gmra.mxu0 %v419
    %v2216 = vpop.f32.mrf.mxu0
    %v2217 = vadd.f32 0.0, %v2216
    %v2218 = vpop.f32.mrf.mxu0
    %v2219 = vadd.f32 0.0, %v2218
    %2220 = vdwg.mxu0
    %2221 = vmatpush.bf16.msra.mxu0 %v1389
    %2222 = vmatpush.bf16.msra.mxu0 %v1383
    %2223 = vmatpush.bf16.msra.mxu0 %v1377
    %2224 = vmatpush.bf16.msra.mxu0 %v1371
    %2225 = vmatpush.bf16.msra.mxu0 %v1365
    %2226 = vmatpush.bf16.msra.mxu0 %v1359
    %2227 = vmatpush.bf16.msra.mxu0 %v1353
    %2228 = vmatpush.bf16.msra.mxu0 %v1347
    %2229 = vmatmul.bf16.gmra.mxu0 %v420
    %v2230 = vpop.f32.mrf.mxu0
    %v2231 = vadd.f32 %v2217, %v2230
    %v2232 = vpop.f32.mrf.mxu0
    %v2233 = vadd.f32 %v2219, %v2232
    %2234 = vdwg.mxu0
    %2235 = vmatpush.bf16.msra.mxu0 %v1437
    %2236 = vmatpush.bf16.msra.mxu0 %v1431
    %2237 = vmatpush.bf16.msra.mxu0 %v1425
    %2238 = vmatpush.bf16.msra.mxu0 %v1419
    %2239 = vmatpush.bf16.msra.mxu0 %v1413
    %2240 = vmatpush.bf16.msra.mxu0 %v1407
    %2241 = vmatpush.bf16.msra.mxu0 %v1401
    %2242 = vmatpush.bf16.msra.mxu0 %v1395
    %2243 = vmatmul.bf16.gmra.mxu0 %v421
    %v2244 = vpop.f32.mrf.mxu0
    %v2245 = vadd.f32 %v2231, %v2244
    %v2246 = vpop.f32.mrf.mxu0
    %v2247 = vadd.f32 %v2233, %v2246
    %2248 = vdwg.mxu0
    %2249 = vmatpush.bf16.msra.mxu0 %v1485
    %2250 = vmatpush.bf16.msra.mxu0 %v1479
    %2251 = vmatpush.bf16.msra.mxu0 %v1473
    %2252 = vmatpush.bf16.msra.mxu0 %v1467
    %2253 = vmatpush.bf16.msra.mxu0 %v1461
    %2254 = vmatpush.bf16.msra.mxu0 %v1455
    %2255 = vmatpush.bf16.msra.mxu0 %v1449
    %2256 = vmatpush.bf16.msra.mxu0 %v1443
    %2257 = vmatmul.bf16.gmra.mxu0 %v422
    %v2258 = vpop.f32.mrf.mxu0
    %v2259 = vadd.f32 %v2245, %v2258
    %v2260 = vpop.f32.mrf.mxu0
    %v2261 = vadd.f32 %v2247, %v2260
    %2262 = vdwg.mxu0
    %2263 = vmatpush.bf16.msra.mxu0 %v1533
    %2264 = vmatpush.bf16.msra.mxu0 %v1527
    %2265 = vmatpush.bf16.msra.mxu0 %v1521
    %2266 = vmatpush.bf16.msra.mxu0 %v1515
    %2267 = vmatpush.bf16.msra.mxu0 %v1509
    %2268 = vmatpush.bf16.msra.mxu0 %v1503
    %2269 = vmatpush.bf16.msra.mxu0 %v1497
    %2270 = vmatpush.bf16.msra.mxu0 %v1491
    %2271 = vmatmul.bf16.gmra.mxu0 %v423
    %v2272 = vpop.f32.mrf.mxu0
    %v2273 = vadd.f32 %v2259, %v2272
    %v2274 = vpop.f32.mrf.mxu0
    %v2275 = vadd.f32 %v2261, %v2274
    %2276 = vdwg.mxu0
    %2277 = vmatpush.bf16.msra.mxu0 %v1581
    %2278 = vmatpush.bf16.msra.mxu0 %v1575
    %2279 = vmatpush.bf16.msra.mxu0 %v1569
    %2280 = vmatpush.bf16.msra.mxu0 %v1563
    %2281 = vmatpush.bf16.msra.mxu0 %v1557
    %2282 = vmatpush.bf16.msra.mxu0 %v1551
    %2283 = vmatpush.bf16.msra.mxu0 %v1545
    %2284 = vmatpush.bf16.msra.mxu0 %v1539
    %2285 = vmatmul.bf16.gmra.mxu0 %v424
    %v2286 = vpop.f32.mrf.mxu0
    %v2287 = vadd.f32 %v2273, %v2286
    %v2288 = vpop.f32.mrf.mxu0
    %v2289 = vadd.f32 %v2275, %v2288
    %2290 = vdwg.mxu0
    %2291 = vmatpush.bf16.msra.mxu0 %v1342
    %2292 = vmatpush.bf16.msra.mxu0 %v1336
    %2293 = vmatpush.bf16.msra.mxu0 %v1330
    %2294 = vmatpush.bf16.msra.mxu0 %v1324
    %2295 = vmatpush.bf16.msra.mxu0 %v1318
    %2296 = vmatpush.bf16.msra.mxu0 %v1312
    %2297 = vmatpush.bf16.msra.mxu0 %v1306
    %2298 = vmatpush.bf16.msra.mxu0 %v1300
    %2299 = vmatmul.bf16.gmra.mxu0 %v419
    %v2300 = vpop.f32.mrf.mxu0
    %v2301 = vadd.f32 0.0, %v2300
    %v2302 = vpop.f32.mrf.mxu0
    %v2303 = vadd.f32 0.0, %v2302
    %2304 = vdwg.mxu0
    %2305 = vmatpush.bf16.msra.mxu0 %v1390
    %2306 = vmatpush.bf16.msra.mxu0 %v1384
    %2307 = vmatpush.bf16.msra.mxu0 %v1378
    %2308 = vmatpush.bf16.msra.mxu0 %v1372
    %2309 = vmatpush.bf16.msra.mxu0 %v1366
    %2310 = vmatpush.bf16.msra.mxu0 %v1360
    %2311 = vmatpush.bf16.msra.mxu0 %v1354
    %2312 = vmatpush.bf16.msra.mxu0 %v1348
    %2313 = vmatmul.bf16.gmra.mxu0 %v420
    %v2314 = vpop.f32.mrf.mxu0
    %v2315 = vadd.f32 %v2301, %v2314
    %v2316 = vpop.f32.mrf.mxu0
    %v2317 = vadd.f32 %v2303, %v2316
    %2318 = vdwg.mxu0
    %2319 = vmatpush.bf16.msra.mxu0 %v1438
    %2320 = vmatpush.bf16.msra.mxu0 %v1432
    %2321 = vmatpush.bf16.msra.mxu0 %v1426
    %2322 = vmatpush.bf16.msra.mxu0 %v1420
    %2323 = vmatpush.bf16.msra.mxu0 %v1414
    %2324 = vmatpush.bf16.msra.mxu0 %v1408
    %2325 = vmatpush.bf16.msra.mxu0 %v1402
    %2326 = vmatpush.bf16.msra.mxu0 %v1396
    %2327 = vmatmul.bf16.gmra.mxu0 %v421
    %v2328 = vpop.f32.mrf.mxu0
    %v2329 = vadd.f32 %v2315, %v2328
    %v2330 = vpop.f32.mrf.mxu0
    %v2331 = vadd.f32 %v2317, %v2330
    %2332 = vdwg.mxu0
    %2333 = vmatpush.bf16.msra.mxu0 %v1486
    %2334 = vmatpush.bf16.msra.mxu0 %v1480
    %2335 = vmatpush.bf16.msra.mxu0 %v1474
    %2336 = vmatpush.bf16.msra.mxu0 %v1468
    %2337 = vmatpush.bf16.msra.mxu0 %v1462
    %2338 = vmatpush.bf16.msra.mxu0 %v1456
    %2339 = vmatpush.bf16.msra.mxu0 %v1450
    %2340 = vmatpush.bf16.msra.mxu0 %v1444
    %2341 = vmatmul.bf16.gmra.mxu0 %v422
    %v2342 = vpop.f32.mrf.mxu0
    %v2343 = vadd.f32 %v2329, %v2342
    %v2344 = vpop.f32.mrf.mxu0
    %v2345 = vadd.f32 %v2331, %v2344
    %2346 = vdwg.mxu0
    %2347 = vmatpush.bf16.msra.mxu0 %v1534
    %2348 = vmatpush.bf16.msra.mxu0 %v1528
    %2349 = vmatpush.bf16.msra.mxu0 %v1522
    %2350 = vmatpush.bf16.msra.mxu0 %v1516
    %2351 = vmatpush.bf16.msra.mxu0 %v1510
    %2352 = vmatpush.bf16.msra.mxu0 %v1504
    %2353 = vmatpush.bf16.msra.mxu0 %v1498
    %2354 = vmatpush.bf16.msra.mxu0 %v1492
    %2355 = vmatmul.bf16.gmra.mxu0 %v423
    %v2356 = vpop.f32.mrf.mxu0
    %v2357 = vadd.f32 %v2343, %v2356
    %v2358 = vpop.f32.mrf.mxu0
    %v2359 = vadd.f32 %v2345, %v2358
    %2360 = vdwg.mxu0
    %2361 = vmatpush.bf16.msra.mxu0 %v1582
    %2362 = vmatpush.bf16.msra.mxu0 %v1576
    %2363 = vmatpush.bf16.msra.mxu0 %v1570
    %2364 = vmatpush.bf16.msra.mxu0 %v1564
    %2365 = vmatpush.bf16.msra.mxu0 %v1558
    %2366 = vmatpush.bf16.msra.mxu0 %v1552
    %2367 = vmatpush.bf16.msra.mxu0 %v1546
    %2368 = vmatpush.bf16.msra.mxu0 %v1540
    %2369 = vmatmul.bf16.gmra.mxu0 %v424
    %v2370 = vpop.f32.mrf.mxu0
    %v2371 = vadd.f32 %v2357, %v2370
    %v2372 = vpop.f32.mrf.mxu0
    %v2373 = vadd.f32 %v2359, %v2372
    %2374 = vdwg.mxu0
    %v2375 = vtanh.pop %v1951
    %v2376 = vtanh.pop %v2035
    %v2377 = vtanh.pop %v2119
    %v2378 = vtanh.pop %v2203
    %v2379 = vtanh.pop %v2287
    %v2380 = vtanh.pop %v2371
    %v2381 = vtanh.pop %v1953
    %v2382 = vtanh.pop %v2037
    %v2383 = vtanh.pop %v2121
    %v2384 = vtanh.pop %v2205
    %v2385 = vtanh.pop %v2289
    %v2386 = vtanh.pop %v2373
    %v2387 = vpack.c.bf16 %v2381, %v2375
    %v2388 = vpack.c.bf16 %v2382, %v2376
    %v2389 = vpack.c.bf16 %v2383, %v2377
    %v2390 = vpack.c.bf16 %v2384, %v2378
    %v2391 = vpack.c.bf16 %v2385, %v2379
    %v2392 = vpack.c.bf16 %v2386, %v2380
    %v2393 = vld [vmem:[%s3] sm:$0xff]
    %v2394 = vld [vmem:[%s3 + $0x8] sm:$0xff]
    %v2395 = vld [vmem:[%s3 + $0x10] sm:$0xff]
    %v2396 = vld [vmem:[%s3 + $0x18] sm:$0xff]
    %v2397 = vld [vmem:[%s3 + $0x20] sm:$0xff]
    %v2398 = vld [vmem:[%s3 + $0x28] sm:$0xff]
    %v2399 = vld [vmem:[%s3 + $0x30] sm:$0xff]
    %v2400 = vld [vmem:[%s3 + $0x38] sm:$0xff]
    %v2401 = vld [vmem:[%s3 + $0x40] sm:$0xff]
    %v2402 = vld [vmem:[%s3 + $0x48] sm:$0xff]
    %v2403 = vld [vmem:[%s3 + $0x50] sm:$0xff]
    %v2404 = vld [vmem:[%s3 + $0x58] sm:$0xff]
    %v2405 = vld [vmem:[%s3 + $0x60] sm:$0xff]
    %v2406 = vld [vmem:[%s3 + $0x68] sm:$0xff]
    %v2407 = vld [vmem:[%s3 + $0x70] sm:$0xff]
    %v2408 = vld [vmem:[%s3 + $0x78] sm:$0xff]
    %v2409 = vld [vmem:[%s3 + $0x80] sm:$0xff]
    %v2410 = vld [vmem:[%s3 + $0x88] sm:$0xff]
    %v2411 = vld [vmem:[%s3 + $0x90] sm:$0xff]
    %v2412 = vld [vmem:[%s3 + $0x98] sm:$0xff]
    %v2413 = vld [vmem:[%s3 + $0xa0] sm:$0xff]
    %v2414 = vld [vmem:[%s3 + $0xa8] sm:$0xff]
    %v2415 = vld [vmem:[%s3 + $0xb0] sm:$0xff]
    %v2416 = vld [vmem:[%s3 + $0xb8] sm:$0xff]
    %v2417 = vld [vmem:[%s3 + $0xc0] sm:$0xff]
    %v2418 = vld [vmem:[%s3 + $0xc8] sm:$0xff]
    %v2419 = vld [vmem:[%s3 + $0xd0] sm:$0xff]
    %v2420 = vld [vmem:[%s3 + $0xd8] sm:$0xff]
    %v2421 = vld [vmem:[%s3 + $0xe0] sm:$0xff]
    %v2422 = vld [vmem:[%s3 + $0xe8] sm:$0xff]
    %v2423 = vld [vmem:[%s3 + $0xf0] sm:$0xff]
    %v2424 = vld [vmem:[%s3 + $0xf8] sm:$0xff]
    %v2425 = vld [vmem:[%s3 + $0x100] sm:$0xff]
    %v2426 = vld [vmem:[%s3 + $0x108] sm:$0xff]
    %v2427 = vld [vmem:[%s3 + $0x110] sm:$0xff]
    %v2428 = vld [vmem:[%s3 + $0x118] sm:$0xff]
    %v2429 = vld [vmem:[%s3 + $0x120] sm:$0xff]
    %v2430 = vld [vmem:[%s3 + $0x128] sm:$0xff]
    %v2431 = vld [vmem:[%s3 + $0x130] sm:$0xff]
    %v2432 = vld [vmem:[%s3 + $0x138] sm:$0xff]
    %v2433 = vld [vmem:[%s3 + $0x140] sm:$0xff]
    %v2434 = vld [vmem:[%s3 + $0x148] sm:$0xff]
    %v2435 = vld [vmem:[%s3 + $0x150] sm:$0xff]
    %v2436 = vld [vmem:[%s3 + $0x158] sm:$0xff]
    %v2437 = vld [vmem:[%s3 + $0x160] sm:$0xff]
    %v2438 = vld [vmem:[%s3 + $0x168] sm:$0xff]
    %v2439 = vld [vmem:[%s3 + $0x170] sm:$0xff]
    %v2440 = vld [vmem:[%s3 + $0x178] sm:$0xff]
    %v2441 = vld [vmem:[%s3 + $0x180] sm:$0xff]
    %v2442 = vld [vmem:[%s3 + $0x188] sm:$0xff]
    %v2443 = vld [vmem:[%s3 + $0x190] sm:$0xff]
    %v2444 = vld [vmem:[%s3 + $0x198] sm:$0xff]
    %v2445 = vld [vmem:[%s3 + $0x1a0] sm:$0xff]
    %v2446 = vld [vmem:[%s3 + $0x1a8] sm:$0xff]
    %v2447 = vld [vmem:[%s3 + $0x1b0] sm:$0xff]
    %v2448 = vld [vmem:[%s3 + $0x1b8] sm:$0xff]
    %v2449 = vld [vmem:[%s3 + $0x1c0] sm:$0xff]
    %v2450 = vld [vmem:[%s3 + $0x1c8] sm:$0xff]
    %v2451 = vld [vmem:[%s3 + $0x1d0] sm:$0xff]
    %v2452 = vld [vmem:[%s3 + $0x1d8] sm:$0xff]
    %v2453 = vld [vmem:[%s3 + $0x1e0] sm:$0xff]
    %v2454 = vld [vmem:[%s3 + $0x1e8] sm:$0xff]
    %v2455 = vld [vmem:[%s3 + $0x1f0] sm:$0xff]
    %v2456 = vld [vmem:[%s3 + $0x1f8] sm:$0xff]
    %v2457 = vld [vmem:[%s3 + $0x200] sm:$0xff]
    %v2458 = vld [vmem:[%s3 + $0x208] sm:$0xff]
    %v2459 = vld [vmem:[%s3 + $0x210] sm:$0xff]
    %v2460 = vld [vmem:[%s3 + $0x218] sm:$0xff]
    %v2461 = vld [vmem:[%s3 + $0x220] sm:$0xff]
    %v2462 = vld [vmem:[%s3 + $0x228] sm:$0xff]
    %v2463 = vld [vmem:[%s3 + $0x230] sm:$0xff]
    %v2464 = vld [vmem:[%s3 + $0x238] sm:$0xff]
    %v2465 = vld [vmem:[%s3 + $0x240] sm:$0xff]
    %v2466 = vld [vmem:[%s3 + $0x248] sm:$0xff]
    %v2467 = vld [vmem:[%s3 + $0x250] sm:$0xff]
    %v2468 = vld [vmem:[%s3 + $0x258] sm:$0xff]
    %v2469 = vld [vmem:[%s3 + $0x260] sm:$0xff]
    %v2470 = vld [vmem:[%s3 + $0x268] sm:$0xff]
    %v2471 = vld [vmem:[%s3 + $0x270] sm:$0xff]
    %v2472 = vld [vmem:[%s3 + $0x278] sm:$0xff]
    %v2473 = vld [vmem:[%s3 + $0x280] sm:$0xff]
    %v2474 = vld [vmem:[%s3 + $0x288] sm:$0xff]
    %v2475 = vld [vmem:[%s3 + $0x290] sm:$0xff]
    %v2476 = vld [vmem:[%s3 + $0x298] sm:$0xff]
    %v2477 = vld [vmem:[%s3 + $0x2a0] sm:$0xff]
    %v2478 = vld [vmem:[%s3 + $0x2a8] sm:$0xff]
    %v2479 = vld [vmem:[%s3 + $0x2b0] sm:$0xff]
    %v2480 = vld [vmem:[%s3 + $0x2b8] sm:$0xff]
    %v2481 = vld [vmem:[%s3 + $0x2c0] sm:$0xff]
    %v2482 = vld [vmem:[%s3 + $0x2c8] sm:$0xff]
    %v2483 = vld [vmem:[%s3 + $0x2d0] sm:$0xff]
    %v2484 = vld [vmem:[%s3 + $0x2d8] sm:$0xff]
    %v2485 = vld [vmem:[%s3 + $0x2e0] sm:$0xff]
    %v2486 = vld [vmem:[%s3 + $0x2e8] sm:$0xff]
    %v2487 = vld [vmem:[%s3 + $0x2f0] sm:$0xff]
    %v2488 = vld [vmem:[%s3 + $0x2f8] sm:$0xff]
    %v2489 = vld [vmem:[%s1] sm:$0xf]
    %v2490 = vld [vmem:[%s1 + $0x4] sm:$0xf]
    %v2491 = vld [vmem:[%s4] sm:$0xff]
    %v2492 = vld [vmem:[%s4 + $0x8] sm:$0xff]
    %v2493 = vld [vmem:[%s4 + $0x10] sm:$0xff]
    %v2494 = vld [vmem:[%s4 + $0x18] sm:$0xff]
    %v2495 = vld [vmem:[%s4 + $0x20] sm:$0xff]
    %v2496 = vld [vmem:[%s4 + $0x28] sm:$0xff]
    %v2497 = vld [vmem:[%s4 + $0x30] sm:$0xff]
    %v2498 = vld [vmem:[%s4 + $0x38] sm:$0xff]
    %v2499 = vld [vmem:[%s4 + $0x40] sm:$0xff]
    %v2500 = vld [vmem:[%s4 + $0x48] sm:$0xff]
    %v2501 = vld [vmem:[%s4 + $0x50] sm:$0xff]
    %v2502 = vld [vmem:[%s4 + $0x58] sm:$0xff]
    %v2503 = vld [vmem:[%s4 + $0x60] sm:$0xff]
    %v2504 = vld [vmem:[%s4 + $0x68] sm:$0xff]
    %v2505 = vld [vmem:[%s4 + $0x70] sm:$0xff]
    %v2506 = vld [vmem:[%s4 + $0x78] sm:$0xff]
    %v2509 = vunpack.c.l.b16 %v2489
    %v2510 = vunpack.c.l.b16 %v2490
    %v2511 = vpack.c.b16 %v2510, %v2509
    %v2529 = vunpack.c.l.b16 %v2491
    %v2530 = vunpack.c.h.b16 %v2491
    %v2531 = vunpack.c.l.b16 %v2492
    %v2532 = vunpack.c.h.b16 %v2492
    %v2533 = vunpack.c.l.b16 %v2493
    %v2534 = vunpack.c.h.b16 %v2493
    %v2535 = vunpack.c.l.b16 %v2494
    %v2536 = vunpack.c.h.b16 %v2494
    %v2537 = vunpack.c.l.b16 %v2495
    %v2538 = vunpack.c.h.b16 %v2495
    %v2539 = vunpack.c.l.b16 %v2496
    %v2540 = vunpack.c.h.b16 %v2496
    %v2541 = vunpack.c.l.b16 %v2497
    %v2542 = vunpack.c.h.b16 %v2497
    %v2543 = vunpack.c.l.b16 %v2498
    %v2544 = vunpack.c.h.b16 %v2498
    %v2545 = vunpack.c.l.b16 %v2499
    %v2546 = vunpack.c.h.b16 %v2499
    %v2547 = vunpack.c.l.b16 %v2500
    %v2548 = vunpack.c.h.b16 %v2500
    %v2549 = vunpack.c.l.b16 %v2501
    %v2550 = vunpack.c.h.b16 %v2501
    %v2551 = vunpack.c.l.b16 %v2502
    %v2552 = vunpack.c.h.b16 %v2502
    %v2553 = vunpack.c.l.b16 %v2503
    %v2554 = vunpack.c.h.b16 %v2503
    %v2555 = vunpack.c.l.b16 %v2504
    %v2556 = vunpack.c.h.b16 %v2504
    %v2557 = vunpack.c.l.b16 %v2505
    %v2558 = vunpack.c.h.b16 %v2505
    %v2559 = vunpack.c.l.b16 %v2506
    %v2560 = vunpack.c.h.b16 %v2506
    %v2561 = vpack.c.b16 %v2531, %v2529
    %v2562 = vpack.c.b16 %v2532, %v2530
    %v2563 = vpack.c.b16 %v2535, %v2533
    %v2564 = vpack.c.b16 %v2536, %v2534
    %v2565 = vpack.c.b16 %v2539, %v2537
    %v2566 = vpack.c.b16 %v2540, %v2538
    %v2567 = vpack.c.b16 %v2543, %v2541
    %v2568 = vpack.c.b16 %v2544, %v2542
    %v2569 = vpack.c.b16 %v2547, %v2545
    %v2570 = vpack.c.b16 %v2548, %v2546
    %v2571 = vpack.c.b16 %v2551, %v2549
    %v2572 = vpack.c.b16 %v2552, %v2550
    %v2573 = vpack.c.b16 %v2555, %v2553
    %v2574 = vpack.c.b16 %v2556, %v2554
    %v2575 = vpack.c.b16 %v2559, %v2557
    %v2576 = vpack.c.b16 %v2560, %v2558
    %2593 = vmatpush.bf16.msra.mxu0 %v2575
    %2594 = vmatpush.bf16.msra.mxu0 %v2573
    %2595 = vmatpush.bf16.msra.mxu0 %v2571
    %2596 = vmatpush.bf16.msra.mxu0 %v2569
    %2597 = vmatpush.bf16.msra.mxu0 %v2567
    %2598 = vmatpush.bf16.msra.mxu0 %v2565
    %2599 = vmatpush.bf16.msra.mxu0 %v2563
    %2600 = vmatpush.bf16.msra.mxu0 %v2561
    %2601 = vmatmul.bf16.gmra.mxu0 %v2511
    %v2602 = vpop.f32.mrf.mxu0
    %v2603 = vadd.f32 0.0, %v2602
    %v2604 = vpop.f32.mrf.mxu0
    %v2605 = vadd.f32 0.0, %v2604
    %2606 = vdwg.mxu0
    %2607 = vmatpush.bf16.msra.mxu0 %v2576
    %2608 = vmatpush.bf16.msra.mxu0 %v2574
    %2609 = vmatpush.bf16.msra.mxu0 %v2572
    %2610 = vmatpush.bf16.msra.mxu0 %v2570
    %2611 = vmatpush.bf16.msra.mxu0 %v2568
    %2612 = vmatpush.bf16.msra.mxu0 %v2566
    %2613 = vmatpush.bf16.msra.mxu0 %v2564
    %2614 = vmatpush.bf16.msra.mxu0 %v2562
    %2615 = vmatmul.bf16.gmra.mxu0 %v2511
    %v2616 = vpop.f32.mrf.mxu0
    %v2617 = vadd.f32 0.0, %v2616
    %v2618 = vpop.f32.mrf.mxu0
    %v2619 = vadd.f32 0.0, %v2618
    %2620 = vdwg.mxu0
    %v2717 = vunpack.c.l.b16 %v2393
    %v2718 = vunpack.c.h.b16 %v2393
    %v2719 = vunpack.c.l.b16 %v2394
    %v2720 = vunpack.c.h.b16 %v2394
    %v2721 = vunpack.c.l.b16 %v2395
    %v2722 = vunpack.c.h.b16 %v2395
    %v2723 = vunpack.c.l.b16 %v2396
    %v2724 = vunpack.c.h.b16 %v2396
    %v2725 = vunpack.c.l.b16 %v2397
    %v2726 = vunpack.c.h.b16 %v2397
    %v2727 = vunpack.c.l.b16 %v2398
    %v2728 = vunpack.c.h.b16 %v2398
    %v2729 = vunpack.c.l.b16 %v2399
    %v2730 = vunpack.c.h.b16 %v2399
    %v2731 = vunpack.c.l.b16 %v2400
    %v2732 = vunpack.c.h.b16 %v2400
    %v2733 = vunpack.c.l.b16 %v2401
    %v2734 = vunpack.c.h.b16 %v2401
    %v2735 = vunpack.c.l.b16 %v2402
    %v2736 = vunpack.c.h.b16 %v2402
    %v2737 = vunpack.c.l.b16 %v2403
    %v2738 = vunpack.c.h.b16 %v2403
    %v2739 = vunpack.c.l.b16 %v2404
    %v2740 = vunpack.c.h.b16 %v2404
    %v2741 = vunpack.c.l.b16 %v2405
    %v2742 = vunpack.c.h.b16 %v2405
    %v2743 = vunpack.c.l.b16 %v2406
    %v2744 = vunpack.c.h.b16 %v2406
    %v2745 = vunpack.c.l.b16 %v2407
    %v2746 = vunpack.c.h.b16 %v2407
    %v2747 = vunpack.c.l.b16 %v2408
    %v2748 = vunpack.c.h.b16 %v2408
    %v2749 = vunpack.c.l.b16 %v2409
    %v2750 = vunpack.c.h.b16 %v2409
    %v2751 = vunpack.c.l.b16 %v2410
    %v2752 = vunpack.c.h.b16 %v2410
    %v2753 = vunpack.c.l.b16 %v2411
    %v2754 = vunpack.c.h.b16 %v2411
    %v2755 = vunpack.c.l.b16 %v2412
    %v2756 = vunpack.c.h.b16 %v2412
    %v2757 = vunpack.c.l.b16 %v2413
    %v2758 = vunpack.c.h.b16 %v2413
    %v2759 = vunpack.c.l.b16 %v2414
    %v2760 = vunpack.c.h.b16 %v2414
    %v2761 = vunpack.c.l.b16 %v2415
    %v2762 = vunpack.c.h.b16 %v2415
    %v2763 = vunpack.c.l.b16 %v2416
    %v2764 = vunpack.c.h.b16 %v2416
    %v2765 = vunpack.c.l.b16 %v2417
    %v2766 = vunpack.c.h.b16 %v2417
    %v2767 = vunpack.c.l.b16 %v2418
    %v2768 = vunpack.c.h.b16 %v2418
    %v2769 = vunpack.c.l.b16 %v2419
    %v2770 = vunpack.c.h.b16 %v2419
    %v2771 = vunpack.c.l.b16 %v2420
    %v2772 = vunpack.c.h.b16 %v2420
    %v2773 = vunpack.c.l.b16 %v2421
    %v2774 = vunpack.c.h.b16 %v2421
    %v2775 = vunpack.c.l.b16 %v2422
    %v2776 = vunpack.c.h.b16 %v2422
    %v2777 = vunpack.c.l.b16 %v2423
    %v2778 = vunpack.c.h.b16 %v2423
    %v2779 = vunpack.c.l.b16 %v2424
    %v2780 = vunpack.c.h.b16 %v2424
    %v2781 = vunpack.c.l.b16 %v2425
    %v2782 = vunpack.c.h.b16 %v2425
    %v2783 = vunpack.c.l.b16 %v2426
    %v2784 = vunpack.c.h.b16 %v2426
    %v2785 = vunpack.c.l.b16 %v2427
    %v2786 = vunpack.c.h.b16 %v2427
    %v2787 = vunpack.c.l.b16 %v2428
    %v2788 = vunpack.c.h.b16 %v2428
    %v2789 = vunpack.c.l.b16 %v2429
    %v2790 = vunpack.c.h.b16 %v2429
    %v2791 = vunpack.c.l.b16 %v2430
    %v2792 = vunpack.c.h.b16 %v2430
    %v2793 = vunpack.c.l.b16 %v2431
    %v2794 = vunpack.c.h.b16 %v2431
    %v2795 = vunpack.c.l.b16 %v2432
    %v2796 = vunpack.c.h.b16 %v2432
    %v2797 = vunpack.c.l.b16 %v2433
    %v2798 = vunpack.c.h.b16 %v2433
    %v2799 = vunpack.c.l.b16 %v2434
    %v2800 = vunpack.c.h.b16 %v2434
    %v2801 = vunpack.c.l.b16 %v2435
    %v2802 = vunpack.c.h.b16 %v2435
    %v2803 = vunpack.c.l.b16 %v2436
    %v2804 = vunpack.c.h.b16 %v2436
    %v2805 = vunpack.c.l.b16 %v2437
    %v2806 = vunpack.c.h.b16 %v2437
    %v2807 = vunpack.c.l.b16 %v2438
    %v2808 = vunpack.c.h.b16 %v2438
    %v2809 = vunpack.c.l.b16 %v2439
    %v2810 = vunpack.c.h.b16 %v2439
    %v2811 = vunpack.c.l.b16 %v2440
    %v2812 = vunpack.c.h.b16 %v2440
    %v2813 = vunpack.c.l.b16 %v2441
    %v2814 = vunpack.c.h.b16 %v2441
    %v2815 = vunpack.c.l.b16 %v2442
    %v2816 = vunpack.c.h.b16 %v2442
    %v2817 = vunpack.c.l.b16 %v2443
    %v2818 = vunpack.c.h.b16 %v2443
    %v2819 = vunpack.c.l.b16 %v2444
    %v2820 = vunpack.c.h.b16 %v2444
    %v2821 = vunpack.c.l.b16 %v2445
    %v2822 = vunpack.c.h.b16 %v2445
    %v2823 = vunpack.c.l.b16 %v2446
    %v2824 = vunpack.c.h.b16 %v2446
    %v2825 = vunpack.c.l.b16 %v2447
    %v2826 = vunpack.c.h.b16 %v2447
    %v2827 = vunpack.c.l.b16 %v2448
    %v2828 = vunpack.c.h.b16 %v2448
    %v2829 = vunpack.c.l.b16 %v2449
    %v2830 = vunpack.c.h.b16 %v2449
    %v2831 = vunpack.c.l.b16 %v2450
    %v2832 = vunpack.c.h.b16 %v2450
    %v2833 = vunpack.c.l.b16 %v2451
    %v2834 = vunpack.c.h.b16 %v2451
    %v2835 = vunpack.c.l.b16 %v2452
    %v2836 = vunpack.c.h.b16 %v2452
    %v2837 = vunpack.c.l.b16 %v2453
    %v2838 = vunpack.c.h.b16 %v2453
    %v2839 = vunpack.c.l.b16 %v2454
    %v2840 = vunpack.c.h.b16 %v2454
    %v2841 = vunpack.c.l.b16 %v2455
    %v2842 = vunpack.c.h.b16 %v2455
    %v2843 = vunpack.c.l.b16 %v2456
    %v2844 = vunpack.c.h.b16 %v2456
    %v2845 = vunpack.c.l.b16 %v2457
    %v2846 = vunpack.c.h.b16 %v2457
    %v2847 = vunpack.c.l.b16 %v2458
    %v2848 = vunpack.c.h.b16 %v2458
    %v2849 = vunpack.c.l.b16 %v2459
    %v2850 = vunpack.c.h.b16 %v2459
    %v2851 = vunpack.c.l.b16 %v2460
    %v2852 = vunpack.c.h.b16 %v2460
    %v2853 = vunpack.c.l.b16 %v2461
    %v2854 = vunpack.c.h.b16 %v2461
    %v2855 = vunpack.c.l.b16 %v2462
    %v2856 = vunpack.c.h.b16 %v2462
    %v2857 = vunpack.c.l.b16 %v2463
    %v2858 = vunpack.c.h.b16 %v2463
    %v2859 = vunpack.c.l.b16 %v2464
    %v2860 = vunpack.c.h.b16 %v2464
    %v2861 = vunpack.c.l.b16 %v2465
    %v2862 = vunpack.c.h.b16 %v2465
    %v2863 = vunpack.c.l.b16 %v2466
    %v2864 = vunpack.c.h.b16 %v2466
    %v2865 = vunpack.c.l.b16 %v2467
    %v2866 = vunpack.c.h.b16 %v2467
    %v2867 = vunpack.c.l.b16 %v2468
    %v2868 = vunpack.c.h.b16 %v2468
    %v2869 = vunpack.c.l.b16 %v2469
    %v2870 = vunpack.c.h.b16 %v2469
    %v2871 = vunpack.c.l.b16 %v2470
    %v2872 = vunpack.c.h.b16 %v2470
    %v2873 = vunpack.c.l.b16 %v2471
    %v2874 = vunpack.c.h.b16 %v2471
    %v2875 = vunpack.c.l.b16 %v2472
    %v2876 = vunpack.c.h.b16 %v2472
    %v2877 = vunpack.c.l.b16 %v2473
    %v2878 = vunpack.c.h.b16 %v2473
    %v2879 = vunpack.c.l.b16 %v2474
    %v2880 = vunpack.c.h.b16 %v2474
    %v2881 = vunpack.c.l.b16 %v2475
    %v2882 = vunpack.c.h.b16 %v2475
    %v2883 = vunpack.c.l.b16 %v2476
    %v2884 = vunpack.c.h.b16 %v2476
    %v2885 = vunpack.c.l.b16 %v2477
    %v2886 = vunpack.c.h.b16 %v2477
    %v2887 = vunpack.c.l.b16 %v2478
    %v2888 = vunpack.c.h.b16 %v2478
    %v2889 = vunpack.c.l.b16 %v2479
    %v2890 = vunpack.c.h.b16 %v2479
    %v2891 = vunpack.c.l.b16 %v2480
    %v2892 = vunpack.c.h.b16 %v2480
    %v2893 = vunpack.c.l.b16 %v2481
    %v2894 = vunpack.c.h.b16 %v2481
    %v2895 = vunpack.c.l.b16 %v2482
    %v2896 = vunpack.c.h.b16 %v2482
    %v2897 = vunpack.c.l.b16 %v2483
    %v2898 = vunpack.c.h.b16 %v2483
    %v2899 = vunpack.c.l.b16 %v2484
    %v2900 = vunpack.c.h.b16 %v2484
    %v2901 = vunpack.c.l.b16 %v2485
    %v2902 = vunpack.c.h.b16 %v2485
    %v2903 = vunpack.c.l.b16 %v2486
    %v2904 = vunpack.c.h.b16 %v2486
    %v2905 = vunpack.c.l.b16 %v2487
    %v2906 = vunpack.c.h.b16 %v2487
    %v2907 = vunpack.c.l.b16 %v2488
    %v2908 = vunpack.c.h.b16 %v2488
    %v2909 = vpack.c.b16 %v2719, %v2717
    %v2910 = vpack.c.b16 %v2720, %v2718
    %v2911 = vpack.c.b16 %v2723, %v2721
    %v2912 = vpack.c.b16 %v2724, %v2722
    %v2913 = vpack.c.b16 %v2727, %v2725
    %v2914 = vpack.c.b16 %v2728, %v2726
    %v2915 = vpack.c.b16 %v2731, %v2729
    %v2916 = vpack.c.b16 %v2732, %v2730
    %v2917 = vpack.c.b16 %v2735, %v2733
    %v2918 = vpack.c.b16 %v2736, %v2734
    %v2919 = vpack.c.b16 %v2739, %v2737
    %v2920 = vpack.c.b16 %v2740, %v2738
    %v2921 = vpack.c.b16 %v2743, %v2741
    %v2922 = vpack.c.b16 %v2744, %v2742
    %v2923 = vpack.c.b16 %v2747, %v2745
    %v2924 = vpack.c.b16 %v2748, %v2746
    %v2925 = vpack.c.b16 %v2751, %v2749
    %v2926 = vpack.c.b16 %v2752, %v2750
    %v2927 = vpack.c.b16 %v2755, %v2753
    %v2928 = vpack.c.b16 %v2756, %v2754
    %v2929 = vpack.c.b16 %v2759, %v2757
    %v2930 = vpack.c.b16 %v2760, %v2758
    %v2931 = vpack.c.b16 %v2763, %v2761
    %v2932 = vpack.c.b16 %v2764, %v2762
    %v2933 = vpack.c.b16 %v2767, %v2765
    %v2934 = vpack.c.b16 %v2768, %v2766
    %v2935 = vpack.c.b16 %v2771, %v2769
    %v2936 = vpack.c.b16 %v2772, %v2770
    %v2937 = vpack.c.b16 %v2775, %v2773
    %v2938 = vpack.c.b16 %v2776, %v2774
    %v2939 = vpack.c.b16 %v2779, %v2777
    %v2940 = vpack.c.b16 %v2780, %v2778
    %v2941 = vpack.c.b16 %v2783, %v2781
    %v2942 = vpack.c.b16 %v2784, %v2782
    %v2943 = vpack.c.b16 %v2787, %v2785
    %v2944 = vpack.c.b16 %v2788, %v2786
    %v2945 = vpack.c.b16 %v2791, %v2789
    %v2946 = vpack.c.b16 %v2792, %v2790
    %v2947 = vpack.c.b16 %v2795, %v2793
    %v2948 = vpack.c.b16 %v2796, %v2794
    %v2949 = vpack.c.b16 %v2799, %v2797
    %v2950 = vpack.c.b16 %v2800, %v2798
    %v2951 = vpack.c.b16 %v2803, %v2801
    %v2952 = vpack.c.b16 %v2804, %v2802
    %v2953 = vpack.c.b16 %v2807, %v2805
    %v2954 = vpack.c.b16 %v2808, %v2806
    %v2955 = vpack.c.b16 %v2811, %v2809
    %v2956 = vpack.c.b16 %v2812, %v2810
    %v2957 = vpack.c.b16 %v2815, %v2813
    %v2958 = vpack.c.b16 %v2816, %v2814
    %v2959 = vpack.c.b16 %v2819, %v2817
    %v2960 = vpack.c.b16 %v2820, %v2818
    %v2961 = vpack.c.b16 %v2823, %v2821
    %v2962 = vpack.c.b16 %v2824, %v2822
    %v2963 = vpack.c.b16 %v2827, %v2825
    %v2964 = vpack.c.b16 %v2828, %v2826
    %v2965 = vpack.c.b16 %v2831, %v2829
    %v2966 = vpack.c.b16 %v2832, %v2830
    %v2967 = vpack.c.b16 %v2835, %v2833
    %v2968 = vpack.c.b16 %v2836, %v2834
    %v2969 = vpack.c.b16 %v2839, %v2837
    %v2970 = vpack.c.b16 %v2840, %v2838
    %v2971 = vpack.c.b16 %v2843, %v2841
    %v2972 = vpack.c.b16 %v2844, %v2842
    %v2973 = vpack.c.b16 %v2847, %v2845
    %v2974 = vpack.c.b16 %v2848, %v2846
    %v2975 = vpack.c.b16 %v2851, %v2849
    %v2976 = vpack.c.b16 %v2852, %v2850
    %v2977 = vpack.c.b16 %v2855, %v2853
    %v2978 = vpack.c.b16 %v2856, %v2854
    %v2979 = vpack.c.b16 %v2859, %v2857
    %v2980 = vpack.c.b16 %v2860, %v2858
    %v2981 = vpack.c.b16 %v2863, %v2861
    %v2982 = vpack.c.b16 %v2864, %v2862
    %v2983 = vpack.c.b16 %v2867, %v2865
    %v2984 = vpack.c.b16 %v2868, %v2866
    %v2985 = vpack.c.b16 %v2871, %v2869
    %v2986 = vpack.c.b16 %v2872, %v2870
    %v2987 = vpack.c.b16 %v2875, %v2873
    %v2988 = vpack.c.b16 %v2876, %v2874
    %v2989 = vpack.c.b16 %v2879, %v2877
    %v2990 = vpack.c.b16 %v2880, %v2878
    %v2991 = vpack.c.b16 %v2883, %v2881
    %v2992 = vpack.c.b16 %v2884, %v2882
    %v2993 = vpack.c.b16 %v2887, %v2885
    %v2994 = vpack.c.b16 %v2888, %v2886
    %v2995 = vpack.c.b16 %v2891, %v2889
    %v2996 = vpack.c.b16 %v2892, %v2890
    %v2997 = vpack.c.b16 %v2895, %v2893
    %v2998 = vpack.c.b16 %v2896, %v2894
    %v2999 = vpack.c.b16 %v2899, %v2897
    %v3000 = vpack.c.b16 %v2900, %v2898
    %v3001 = vpack.c.b16 %v2903, %v2901
    %v3002 = vpack.c.b16 %v2904, %v2902
    %v3003 = vpack.c.b16 %v2907, %v2905
    %v3004 = vpack.c.b16 %v2908, %v2906
    %3101 = vmatpush.bf16.msra.mxu0 %v2923
    %3102 = vmatpush.bf16.msra.mxu0 %v2921
    %3103 = vmatpush.bf16.msra.mxu0 %v2919
    %3104 = vmatpush.bf16.msra.mxu0 %v2917
    %3105 = vmatpush.bf16.msra.mxu0 %v2915
    %3106 = vmatpush.bf16.msra.mxu0 %v2913
    %3107 = vmatpush.bf16.msra.mxu0 %v2911
    %3108 = vmatpush.bf16.msra.mxu0 %v2909
    %3109 = vmatmul.bf16.gmra.mxu0 %v2387
    %v3110 = vpop.f32.mrf.mxu0
    %v3111 = vadd.f32 %v2603, %v3110
    %v3112 = vpop.f32.mrf.mxu0
    %v3113 = vadd.f32 %v2605, %v3112
    %3114 = vdwg.mxu0
    %3115 = vmatpush.bf16.msra.mxu0 %v2939
    %3116 = vmatpush.bf16.msra.mxu0 %v2937
    %3117 = vmatpush.bf16.msra.mxu0 %v2935
    %3118 = vmatpush.bf16.msra.mxu0 %v2933
    %3119 = vmatpush.bf16.msra.mxu0 %v2931
    %3120 = vmatpush.bf16.msra.mxu0 %v2929
    %3121 = vmatpush.bf16.msra.mxu0 %v2927
    %3122 = vmatpush.bf16.msra.mxu0 %v2925
    %3123 = vmatmul.bf16.gmra.mxu0 %v2388
    %v3124 = vpop.f32.mrf.mxu0
    %v3125 = vadd.f32 %v3111, %v3124
    %v3126 = vpop.f32.mrf.mxu0
    %v3127 = vadd.f32 %v3113, %v3126
    %3128 = vdwg.mxu0
    %3129 = vmatpush.bf16.msra.mxu0 %v2955
    %3130 = vmatpush.bf16.msra.mxu0 %v2953
    %3131 = vmatpush.bf16.msra.mxu0 %v2951
    %3132 = vmatpush.bf16.msra.mxu0 %v2949
    %3133 = vmatpush.bf16.msra.mxu0 %v2947
    %3134 = vmatpush.bf16.msra.mxu0 %v2945
    %3135 = vmatpush.bf16.msra.mxu0 %v2943
    %3136 = vmatpush.bf16.msra.mxu0 %v2941
    %3137 = vmatmul.bf16.gmra.mxu0 %v2389
    %v3138 = vpop.f32.mrf.mxu0
    %v3139 = vadd.f32 %v3125, %v3138
    %v3140 = vpop.f32.mrf.mxu0
    %v3141 = vadd.f32 %v3127, %v3140
    %3142 = vdwg.mxu0
    %3143 = vmatpush.bf16.msra.mxu0 %v2971
    %3144 = vmatpush.bf16.msra.mxu0 %v2969
    %3145 = vmatpush.bf16.msra.mxu0 %v2967
    %3146 = vmatpush.bf16.msra.mxu0 %v2965
    %3147 = vmatpush.bf16.msra.mxu0 %v2963
    %3148 = vmatpush.bf16.msra.mxu0 %v2961
    %3149 = vmatpush.bf16.msra.mxu0 %v2959
    %3150 = vmatpush.bf16.msra.mxu0 %v2957
    %3151 = vmatmul.bf16.gmra.mxu0 %v2390
    %v3152 = vpop.f32.mrf.mxu0
    %v3153 = vadd.f32 %v3139, %v3152
    %v3154 = vpop.f32.mrf.mxu0
    %v3155 = vadd.f32 %v3141, %v3154
    %3156 = vdwg.mxu0
    %3157 = vmatpush.bf16.msra.mxu0 %v2987
    %3158 = vmatpush.bf16.msra.mxu0 %v2985
    %3159 = vmatpush.bf16.msra.mxu0 %v2983
    %3160 = vmatpush.bf16.msra.mxu0 %v2981
    %3161 = vmatpush.bf16.msra.mxu0 %v2979
    %3162 = vmatpush.bf16.msra.mxu0 %v2977
    %3163 = vmatpush.bf16.msra.mxu0 %v2975
    %3164 = vmatpush.bf16.msra.mxu0 %v2973
    %3165 = vmatmul.bf16.gmra.mxu0 %v2391
    %v3166 = vpop.f32.mrf.mxu0
    %v3167 = vadd.f32 %v3153, %v3166
    %v3168 = vpop.f32.mrf.mxu0
    %v3169 = vadd.f32 %v3155, %v3168
    %3170 = vdwg.mxu0
    %3171 = vmatpush.bf16.msra.mxu0 %v3003
    %3172 = vmatpush.bf16.msra.mxu0 %v3001
    %3173 = vmatpush.bf16.msra.mxu0 %v2999
    %3174 = vmatpush.bf16.msra.mxu0 %v2997
    %3175 = vmatpush.bf16.msra.mxu0 %v2995
    %3176 = vmatpush.bf16.msra.mxu0 %v2993
    %3177 = vmatpush.bf16.msra.mxu0 %v2991
    %3178 = vmatpush.bf16.msra.mxu0 %v2989
    %3179 = vmatmul.bf16.gmra.mxu0 %v2392
    %v3180 = vpop.f32.mrf.mxu0
    %v3181 = vadd.f32 %v3167, %v3180
    %v3182 = vpop.f32.mrf.mxu0
    %v3183 = vadd.f32 %v3169, %v3182
    %3184 = vdwg.mxu0
    %3185 = vmatpush.bf16.msra.mxu0 %v2924
    %3186 = vmatpush.bf16.msra.mxu0 %v2922
    %3187 = vmatpush.bf16.msra.mxu0 %v2920
    %3188 = vmatpush.bf16.msra.mxu0 %v2918
    %3189 = vmatpush.bf16.msra.mxu0 %v2916
    %3190 = vmatpush.bf16.msra.mxu0 %v2914
    %3191 = vmatpush.bf16.msra.mxu0 %v2912
    %3192 = vmatpush.bf16.msra.mxu0 %v2910
    %3193 = vmatmul.bf16.gmra.mxu0 %v2387
    %v3194 = vpop.f32.mrf.mxu0
    %v3195 = vadd.f32 %v2617, %v3194
    %v3196 = vpop.f32.mrf.mxu0
    %v3197 = vadd.f32 %v2619, %v3196
    %3198 = vdwg.mxu0
    %3199 = vmatpush.bf16.msra.mxu0 %v2940
    %3200 = vmatpush.bf16.msra.mxu0 %v2938
    %3201 = vmatpush.bf16.msra.mxu0 %v2936
    %3202 = vmatpush.bf16.msra.mxu0 %v2934
    %3203 = vmatpush.bf16.msra.mxu0 %v2932
    %3204 = vmatpush.bf16.msra.mxu0 %v2930
    %3205 = vmatpush.bf16.msra.mxu0 %v2928
    %3206 = vmatpush.bf16.msra.mxu0 %v2926
    %3207 = vmatmul.bf16.gmra.mxu0 %v2388
    %v3208 = vpop.f32.mrf.mxu0
    %v3209 = vadd.f32 %v3195, %v3208
    %v3210 = vpop.f32.mrf.mxu0
    %v3211 = vadd.f32 %v3197, %v3210
    %3212 = vdwg.mxu0
    %3213 = vmatpush.bf16.msra.mxu0 %v2956
    %3214 = vmatpush.bf16.msra.mxu0 %v2954
    %3215 = vmatpush.bf16.msra.mxu0 %v2952
    %3216 = vmatpush.bf16.msra.mxu0 %v2950
    %3217 = vmatpush.bf16.msra.mxu0 %v2948
    %3218 = vmatpush.bf16.msra.mxu0 %v2946
    %3219 = vmatpush.bf16.msra.mxu0 %v2944
    %3220 = vmatpush.bf16.msra.mxu0 %v2942
    %3221 = vmatmul.bf16.gmra.mxu0 %v2389
    %v3222 = vpop.f32.mrf.mxu0
    %v3223 = vadd.f32 %v3209, %v3222
    %v3224 = vpop.f32.mrf.mxu0
    %v3225 = vadd.f32 %v3211, %v3224
    %3226 = vdwg.mxu0
    %3227 = vmatpush.bf16.msra.mxu0 %v2972
    %3228 = vmatpush.bf16.msra.mxu0 %v2970
    %3229 = vmatpush.bf16.msra.mxu0 %v2968
    %3230 = vmatpush.bf16.msra.mxu0 %v2966
    %3231 = vmatpush.bf16.msra.mxu0 %v2964
    %3232 = vmatpush.bf16.msra.mxu0 %v2962
    %3233 = vmatpush.bf16.msra.mxu0 %v2960
    %3234 = vmatpush.bf16.msra.mxu0 %v2958
    %3235 = vmatmul.bf16.gmra.mxu0 %v2390
    %v3236 = vpop.f32.mrf.mxu0
    %v3237 = vadd.f32 %v3223, %v3236
    %v3238 = vpop.f32.mrf.mxu0
    %v3239 = vadd.f32 %v3225, %v3238
    %3240 = vdwg.mxu0
    %3241 = vmatpush.bf16.msra.mxu0 %v2988
    %3242 = vmatpush.bf16.msra.mxu0 %v2986
    %3243 = vmatpush.bf16.msra.mxu0 %v2984
    %3244 = vmatpush.bf16.msra.mxu0 %v2982
    %3245 = vmatpush.bf16.msra.mxu0 %v2980
    %3246 = vmatpush.bf16.msra.mxu0 %v2978
    %3247 = vmatpush.bf16.msra.mxu0 %v2976
    %3248 = vmatpush.bf16.msra.mxu0 %v2974
    %3249 = vmatmul.bf16.gmra.mxu0 %v2391
    %v3250 = vpop.f32.mrf.mxu0
    %v3251 = vadd.f32 %v3237, %v3250
    %v3252 = vpop.f32.mrf.mxu0
    %v3253 = vadd.f32 %v3239, %v3252
    %3254 = vdwg.mxu0
    %3255 = vmatpush.bf16.msra.mxu0 %v3004
    %3256 = vmatpush.bf16.msra.mxu0 %v3002
    %3257 = vmatpush.bf16.msra.mxu0 %v3000
    %3258 = vmatpush.bf16.msra.mxu0 %v2998
    %3259 = vmatpush.bf16.msra.mxu0 %v2996
    %3260 = vmatpush.bf16.msra.mxu0 %v2994
    %3261 = vmatpush.bf16.msra.mxu0 %v2992
    %3262 = vmatpush.bf16.msra.mxu0 %v2990
    %3263 = vmatmul.bf16.gmra.mxu0 %v2392
    %v3264 = vpop.f32.mrf.mxu0
    %v3265 = vadd.f32 %v3251, %v3264
    %v3266 = vpop.f32.mrf.mxu0
    %v3267 = vadd.f32 %v3253, %v3266
    %3268 = vdwg.mxu0
    %v3269 = vld [vmem:[#allocation4] sm:$0x3]
    %v3271 = vperm.slane %v3269, 0
    %v3272 = vperm.slane %v3269, 1
    %v3275 = vadd.f32 %v3181, %v3271
    %v3276 = vadd.f32 %v3265, %v3272
    %v3277 = vadd.f32 %v3183, %v3271
    %v3278 = vadd.f32 %v3267, %v3272
    %v3279 = vmax.f32 %v3275, 0.0
    %v3280 = vmax.f32 %v3276, 0.0
    %v3281 = vmax.f32 %v3277, 0.0
    %v3282 = vmax.f32 %v3278, 0.0
    %v3283 = vpack.c.bf16 %v3281, %v3279
    %v3284 = vpack.c.bf16 %v3282, %v3280
    %v3285 = vld [vmem:[%s6] sm:$0xf]
    %v3286 = vld [vmem:[%s6 + $0x4] sm:$0xf]
    %v3287 = vld [vmem:[%s6 + $0x8] sm:$0xf]
    %v3288 = vld [vmem:[%s6 + $0xc] sm:$0xf]
    %v3289 = vld [vmem:[%s6 + $0x10] sm:$0xf]
    %v3290 = vld [vmem:[%s6 + $0x14] sm:$0xf]
    %v3291 = vld [vmem:[%s6 + $0x18] sm:$0xf]
    %v3292 = vld [vmem:[%s6 + $0x1c] sm:$0xf]
    %v3293 = vld [vmem:[%s6 + $0x20] sm:$0xf]
    %v3294 = vld [vmem:[%s6 + $0x24] sm:$0xf]
    %v3295 = vld [vmem:[%s6 + $0x28] sm:$0xf]
    %v3296 = vld [vmem:[%s6 + $0x2c] sm:$0xf]
    %v3297 = vld [vmem:[%s6 + $0x30] sm:$0xf]
    %v3298 = vld [vmem:[%s6 + $0x34] sm:$0xf]
    %v3299 = vld [vmem:[%s6 + $0x38] sm:$0xf]
    %v3300 = vld [vmem:[%s6 + $0x3c] sm:$0xf]
    %v3301 = vld [vmem:[%s6 + $0x40] sm:$0xf]
    %v3302 = vld [vmem:[%s6 + $0x44] sm:$0xf]
    %v3303 = vld [vmem:[%s6 + $0x48] sm:$0xf]
    %v3304 = vld [vmem:[%s6 + $0x4c] sm:$0xf]
    %v3305 = vld [vmem:[%s6 + $0x50] sm:$0xf]
    %v3306 = vld [vmem:[%s6 + $0x54] sm:$0xf]
    %v3307 = vld [vmem:[%s6 + $0x58] sm:$0xf]
    %v3308 = vld [vmem:[%s6 + $0x5c] sm:$0xf]
    %v3309 = vld [vmem:[%s6 + $0x60] sm:$0xf]
    %v3310 = vld [vmem:[%s6 + $0x64] sm:$0xf]
    %v3311 = vld [vmem:[%s6 + $0x68] sm:$0xf]
    %v3312 = vld [vmem:[%s6 + $0x6c] sm:$0xf]
    %v3313 = vld [vmem:[%s6 + $0x70] sm:$0xf]
    %v3314 = vld [vmem:[%s6 + $0x74] sm:$0xf]
    %v3315 = vld [vmem:[%s6 + $0x78] sm:$0xf]
    %v3316 = vld [vmem:[%s6 + $0x7c] sm:$0xf]
    %v3317 = vld [vmem:[#allocation6] sm:$0x1]
    %v3319 = vperm.slane %v3317, 0
    %v3353 = vunpack.c.l.b16 %v3285
    %v3354 = vunpack.c.l.b16 %v3286
    %v3355 = vunpack.c.l.b16 %v3287
    %v3356 = vunpack.c.l.b16 %v3288
    %v3357 = vunpack.c.l.b16 %v3289
    %v3358 = vunpack.c.l.b16 %v3290
    %v3359 = vunpack.c.l.b16 %v3291
    %v3360 = vunpack.c.l.b16 %v3292
    %v3361 = vunpack.c.l.b16 %v3293
    %v3362 = vunpack.c.l.b16 %v3294
    %v3363 = vunpack.c.l.b16 %v3295
    %v3364 = vunpack.c.l.b16 %v3296
    %v3365 = vunpack.c.l.b16 %v3297
    %v3366 = vunpack.c.l.b16 %v3298
    %v3367 = vunpack.c.l.b16 %v3299
    %v3368 = vunpack.c.l.b16 %v3300
    %v3369 = vunpack.c.l.b16 %v3301
    %v3370 = vunpack.c.l.b16 %v3302
    %v3371 = vunpack.c.l.b16 %v3303
    %v3372 = vunpack.c.l.b16 %v3304
    %v3373 = vunpack.c.l.b16 %v3305
    %v3374 = vunpack.c.l.b16 %v3306
    %v3375 = vunpack.c.l.b16 %v3307
    %v3376 = vunpack.c.l.b16 %v3308
    %v3377 = vunpack.c.l.b16 %v3309
    %v3378 = vunpack.c.l.b16 %v3310
    %v3379 = vunpack.c.l.b16 %v3311
    %v3380 = vunpack.c.l.b16 %v3312
    %v3381 = vunpack.c.l.b16 %v3313
    %v3382 = vunpack.c.l.b16 %v3314
    %v3383 = vunpack.c.l.b16 %v3315
    %v3384 = vunpack.c.l.b16 %v3316
    %v3385 = vpack.c.b16 %v3354, %v3353
    %v3386 = vpack.c.b16 %v3356, %v3355
    %v3387 = vpack.c.b16 %v3358, %v3357
    %v3388 = vpack.c.b16 %v3360, %v3359
    %v3389 = vpack.c.b16 %v3362, %v3361
    %v3390 = vpack.c.b16 %v3364, %v3363
    %v3391 = vpack.c.b16 %v3366, %v3365
    %v3392 = vpack.c.b16 %v3368, %v3367
    %v3393 = vpack.c.b16 %v3370, %v3369
    %v3394 = vpack.c.b16 %v3372, %v3371
    %v3395 = vpack.c.b16 %v3374, %v3373
    %v3396 = vpack.c.b16 %v3376, %v3375
    %v3397 = vpack.c.b16 %v3378, %v3377
    %v3398 = vpack.c.b16 %v3380, %v3379
    %v3399 = vpack.c.b16 %v3382, %v3381
    %v3400 = vpack.c.b16 %v3384, %v3383
    %3417 = vmatpush.bf16.msra.mxu0 %v3392
    %3418 = vmatpush.bf16.msra.mxu0 %v3391
    %3419 = vmatpush.bf16.msra.mxu0 %v3390
    %3420 = vmatpush.bf16.msra.mxu0 %v3389
    %3421 = vmatpush.bf16.msra.mxu0 %v3388
    %3422 = vmatpush.bf16.msra.mxu0 %v3387
    %3423 = vmatpush.bf16.msra.mxu0 %v3386
    %3424 = vmatpush.bf16.msra.mxu0 %v3385
    %3425 = vmatmul.bf16.gmra.mxu0 %v3283
    %v3426 = vpop.f32.mrf.mxu0
    %v3427 = vadd.f32 %v3319, %v3426
    %v3428 = vpop.f32.mrf.mxu0
    %v3429 = vadd.f32 %v3319, %v3428
    %3430 = vdwg.mxu0
    %3431 = vmatpush.bf16.msra.mxu0 %v3400
    %3432 = vmatpush.bf16.msra.mxu0 %v3399
    %3433 = vmatpush.bf16.msra.mxu0 %v3398
    %3434 = vmatpush.bf16.msra.mxu0 %v3397
    %3435 = vmatpush.bf16.msra.mxu0 %v3396
    %3436 = vmatpush.bf16.msra.mxu0 %v3395
    %3437 = vmatpush.bf16.msra.mxu0 %v3394
    %3438 = vmatpush.bf16.msra.mxu0 %v3393
    %3439 = vmatmul.bf16.gmra.mxu0 %v3284
    %v3440 = vpop.f32.mrf.mxu0
    %v3441 = vadd.f32 %v3427, %v3440
    %v3442 = vpop.f32.mrf.mxu0
    %v3443 = vadd.f32 %v3429, %v3442
    %3444 = vdwg.mxu0
    %v3445 = vmax.f32 %v3441, 0.0
    %v3446 = vmax.f32 %v3443, 0.0
    %v3447 = vpack.c.bf16 %v3446, %v3445
    %v3448 = vld [vmem:[#allocation7] sm:$0xf]
    %v3449 = vld [vmem:[#allocation7 + $0x4] sm:$0xf]
    %v3450 = vld [vmem:[#allocation7 + $0x8] sm:$0xf]
    %v3451 = vld [vmem:[#allocation7 + $0xc] sm:$0xf]
    %v3452 = vld [vmem:[#allocation7 + $0x10] sm:$0xf]
    %v3453 = vld [vmem:[#allocation7 + $0x14] sm:$0xf]
    %v3454 = vld [vmem:[#allocation7 + $0x18] sm:$0xf]
    %v3455 = vld [vmem:[#allocation7 + $0x1c] sm:$0xf]
    %v3456 = vld [vmem:[#allocation7 + $0x20] sm:$0xf]
    %v3457 = vld [vmem:[#allocation7 + $0x24] sm:$0xf]
    %v3458 = vld [vmem:[#allocation7 + $0x28] sm:$0xf]
    %v3459 = vld [vmem:[#allocation7 + $0x2c] sm:$0xf]
    %v3460 = vld [vmem:[#allocation7 + $0x30] sm:$0xf]
    %v3461 = vld [vmem:[#allocation7 + $0x34] sm:$0xf]
    %v3462 = vld [vmem:[#allocation7 + $0x38] sm:$0xf]
    %v3463 = vld [vmem:[#allocation7 + $0x3c] sm:$0xf]
    %v3464 = vld [vmem:[#allocation9] sm:$0x1]
    %v3466 = vperm.slane %v3464, 0
    %v3484 = vunpack.c.l.b16 %v3448
    %v3485 = vunpack.c.l.b16 %v3449
    %v3486 = vunpack.c.l.b16 %v3450
    %v3487 = vunpack.c.l.b16 %v3451
    %v3488 = vunpack.c.l.b16 %v3452
    %v3489 = vunpack.c.l.b16 %v3453
    %v3490 = vunpack.c.l.b16 %v3454
    %v3491 = vunpack.c.l.b16 %v3455
    %v3492 = vunpack.c.l.b16 %v3456
    %v3493 = vunpack.c.l.b16 %v3457
    %v3494 = vunpack.c.l.b16 %v3458
    %v3495 = vunpack.c.l.b16 %v3459
    %v3496 = vunpack.c.l.b16 %v3460
    %v3497 = vunpack.c.l.b16 %v3461
    %v3498 = vunpack.c.l.b16 %v3462
    %v3499 = vunpack.c.l.b16 %v3463
    %v3500 = vpack.c.b16 %v3485, %v3484
    %v3501 = vpack.c.b16 %v3487, %v3486
    %v3502 = vpack.c.b16 %v3489, %v3488
    %v3503 = vpack.c.b16 %v3491, %v3490
    %v3504 = vpack.c.b16 %v3493, %v3492
    %v3505 = vpack.c.b16 %v3495, %v3494
    %v3506 = vpack.c.b16 %v3497, %v3496
    %v3507 = vpack.c.b16 %v3499, %v3498
    %3516 = vmatpush.bf16.msra.mxu0 %v3507
    %3517 = vmatpush.bf16.msra.mxu0 %v3506
    %3518 = vmatpush.bf16.msra.mxu0 %v3505
    %3519 = vmatpush.bf16.msra.mxu0 %v3504
    %3520 = vmatpush.bf16.msra.mxu0 %v3503
    %3521 = vmatpush.bf16.msra.mxu0 %v3502
    %3522 = vmatpush.bf16.msra.mxu0 %v3501
    %3523 = vmatpush.bf16.msra.mxu0 %v3500
    %3524 = vmatmul.bf16.gmra.mxu0 %v3447
    %v3525 = vpop.f32.mrf.mxu0
    %v3526 = vadd.f32 %v3466, %v3525
    %v3527 = vpop.f32.mrf.mxu0
    %v3528 = vadd.f32 %v3466, %v3527
    %3529 = vdwg.mxu0
    %3530 = vst [vmem:[%s10] sm:$0xff] %v3526
    %3531 = vst [vmem:[%s10 + $0x8] sm:$0xff] %v3528
    // Predicated region
    $region62: #{foursquare_forward.1} parent=1 // pred_check
      _
    $region63: #{foursquare_forward.1} parent=1 // pred_check_branch
      %3533 = sbr.rel (0) target = $region65
    $region64: #{foursquare_forward.1} parent=1 // pred_region
      _
    $region65: #{foursquare_forward.1} parent=1 // pred_fallthru
      _
    // Predicated region
    $region66: #{foursquare_forward.1} parent=1 // pred_check
      _
    $region67: #{foursquare_forward.1} parent=1 // pred_check_branch
      %3535 = sbr.rel (0) target = $region69
    $region68: #{foursquare_forward.1} parent=1 // pred_region
      _
    $region69: #{foursquare_forward.1} parent=1 // pred_fallthru
      _
    %3536 = vsyncpa [#allocation3], 1
    %3537 = vsyncpa [#allocation5], 1
    %3538 = vsyncpa [#allocation8], 1

</llo_original>
